<compile_context>
chip_gen: v6e
topology: v6e:2x2x1
jax: 0.10.0
libtpu: 0.0.40
codegen_flags: <defaults>
</compile_context>

<pallas_src>
import functools

import jax
import jax.numpy as jnp
from jax.experimental import pallas as pl
from jax.experimental.pallas import tpu as pltpu


def _round_up(x, m):
    return (x + m - 1) // m * m


# ----------------------------------------------------------------------------
# Kernel bodies
# ----------------------------------------------------------------------------

def _dgm_layer_math(X, S, u_l, wzgr_l, bzgr_l, wh_l, bh_l, *, M, wdt):
    """One DGMCell: fused-gate math in f32, matmul inputs in the weight dtype."""
    UX = jnp.dot(X, u_l, preferred_element_type=jnp.float32)            # (TN, 4M)
    ZGR = jnp.tanh(
        UX[:, :3 * M]
        + jnp.dot(S.astype(wdt), wzgr_l, preferred_element_type=jnp.float32)
        + bzgr_l)                                                        # (TN, 3M)
    Z = ZGR[:, 0 * M:1 * M]
    G = ZGR[:, 1 * M:2 * M]
    R = ZGR[:, 2 * M:3 * M]
    H = jnp.tanh(
        UX[:, 3 * M:]
        + jnp.dot((S * R).astype(wdt), wh_l, preferred_element_type=jnp.float32)
        + bh_l)                                                          # (TN, M)
    return (1.0 - G) * H + Z * S


def _dgm_resident_kernel(x_ref, w0_ref, b0_ref, u_ref, wzgr_ref, bzgr_ref,
                         wh_ref, bh_ref, w1_ref, b1_ref, o_ref, *, M, L, unroll):
    """All weights VMEM-resident; loop over the L DGM cells inside the body.

    Grid: (batch tile,).  Weight stacks carry the full L leading axis and are
    DMA'd once (constant index maps); per-layer slabs are read with static
    (unrolled) or dynamic (fori_loop) first-axis indexing.
    """
    X = x_ref[...]                                                       # (TN, d_in)
    wdt = u_ref.dtype

    S = jnp.tanh(
        jnp.dot(X, w0_ref[...], preferred_element_type=jnp.float32)
        + b0_ref[...])                                                   # (TN, M) f32

    def layer(l, S):
        return _dgm_layer_math(X, S, u_ref[l], wzgr_ref[l], bzgr_ref[l],
                               wh_ref[l], bh_ref[l], M=M, wdt=wdt)

    if unroll:
        for ll in range(L):                                              # static slices
            S = layer(ll, S)
    else:
        S = jax.lax.fori_loop(0, L, layer, S)

    # TODO(synk): with d_out == 1 the store is lane-sparse; a (1, TN) lane-dense
    # output layout would need an in-kernel transpose of S.
    o_ref[...] = (
        jnp.dot(S.astype(wdt), w1_ref[...], preferred_element_type=jnp.float32)
        + b1_ref[...]).astype(o_ref.dtype)


def _dgm_streamed_kernel(x_ref, w0_ref, b0_ref, u_ref, wzgr_ref, bzgr_ref,
                         wh_ref, bh_ref, w1_ref, b1_ref, o_ref, s_ref, *, M):
    """One (batch-tile, layer) grid step; per-layer weights streamed over axis l.

    S lives in the f32 VMEM scratch `s_ref` and is carried across the l axis
    (initialized at l == 0, output written at l == L-1).
    """
    l = pl.program_id(1)
    X = x_ref[...]                                                       # (TN, d_in)
    wdt = u_ref.dtype

    @pl.when(l == 0)
    def _():                                                             # S = tanh(X W0 + b0)
        s_ref[...] = jnp.tanh(
            jnp.dot(X, w0_ref[...], preferred_element_type=jnp.float32)
            + b0_ref[...])

    S = s_ref[...]                                                       # (TN, M) f32
    S_new = _dgm_layer_math(X, S, u_ref[0], wzgr_ref[0], bzgr_ref[0],
                            wh_ref[0], bh_ref[0], M=M, wdt=wdt)
    s_ref[...] = S_new

    @pl.when(l == pl.num_programs(1) - 1)
    def _():                                                             # out = S W1 + b1
        o_ref[...] = (
            jnp.dot(S_new.astype(wdt), w1_ref[...],
                    preferred_element_type=jnp.float32)
            + b1_ref[...]).astype(o_ref.dtype)


# ----------------------------------------------------------------------------
# Parameter packing & wrapper
# ----------------------------------------------------------------------------

def pack_params(params, weight_dtype=jnp.float32):
    """Fuse/transpose per-gate parameters into MXU-friendly slabs (layout only)."""
    W0t, b0, U_all, W_all, B_all, W1t, b1 = params
    wd = weight_dtype
    # Gate order along axis 1 is (z, g, r, h).
    U = jnp.concatenate([U_all[:, g] for g in range(4)], axis=-1)        # (L, d_in, 4M)
    Wzgr = jnp.concatenate([W_all[:, g] for g in range(3)], axis=-1)     # (L, M, 3M)
    Bzgr = jnp.concatenate([B_all[:, g] for g in range(3)], axis=-1)     # (L, 1, 3M)
    Wh = W_all[:, 3]                                                     # (L, M, M)
    Bh = B_all[:, 3]                                                     # (L, 1, M)
    return (W0t.astype(wd), b0.astype(jnp.float32),
            U.astype(wd), Wzgr.astype(wd), Bzgr.astype(jnp.float32),
            Wh.astype(wd), Bh.astype(jnp.float32),
            W1t.astype(wd), b1.astype(jnp.float32))


def resnet_like_dgm_forward(x, params, *, tile_n=256, weight_dtype=jnp.float32,
                            mode="auto"):
    """x: [N, d_in] float32. Returns [N] if d_out == 1 else [N, d_out].

    mode: "auto" | "resident" | "streamed".
    """
    N, d_in = x.shape
    W0t, b0, U, Wzgr, Bzgr, Wh, Bh, W1t, b1 = pack_params(params, weight_dtype)
    L = U.shape[0]
    M = Wh.shape[-1]
    d_out = W1t.shape[1]
    assert tile_n % 8 == 0, "tile_n must be a multiple of 8 (sublane count)"

    # Batch tile: as large as requested, never larger than the (padded) batch.
    tn = min(tile_n, _round_up(N, 8))
    Np = _round_up(N, tn)
    xp = x.astype(weight_dtype)
    if Np != N:
        xp = jnp.pad(xp, ((0, Np - N), (0, 0)))

    itemsize = jnp.dtype(weight_dtype).itemsize
    weights = (W0t, b0, U, Wzgr, Bzgr, Wh, Bh, W1t, b1)
    weight_bytes = sum(int(a.size) * a.dtype.itemsize for a in weights)
    act_bytes = 2 * tn * d_in * itemsize + 2 * tn * d_out * 4
    interm_bytes = 8 * tn * 4 * M * 4        # headroom for UX/ZGR/H/S live values
    # Assume 2x for weights (conservative: Pallas may double-buffer even with a
    # constant index map).
    resident_need = 2 * weight_bytes + act_bytes + interm_bytes + (2 << 20)

    if mode == "auto":
        mode = "resident" if resident_need <= 24 * 1024 * 1024 else "streamed"
    assert mode in ("resident", "streamed"), mode

    # Advisory cost estimate for XLA scheduling around the custom call.
    flops = 2 * Np * (d_in * M + L * (d_in * 4 * M + M * 3 * M + M * M) + M * d_out)
    transcendentals = Np * M * (1 + 4 * L)
    bytes_accessed = xp.size * itemsize + Np * d_out * 4 + weight_bytes
    cost = pl.CostEstimate(flops=int(flops), transcendentals=int(transcendentals),
                           bytes_accessed=int(bytes_accessed))
    out_shape = jax.ShapeDtypeStruct((Np, d_out), jnp.float32)

    if mode == "resident":
        vmem_limit = int(min(64 * 1024 * 1024, max(32 * 1024 * 1024, resident_need)))
        grid = (Np // tn,)
        out = pl.pallas_call(
            functools.partial(_dgm_resident_kernel, M=M, L=L, unroll=(L <= 8)),
            out_shape=out_shape,
            grid_spec=pltpu.PrefetchScalarGridSpec(
                num_scalar_prefetch=0,
                grid=grid,
                in_specs=[
                    pl.BlockSpec((tn, d_in), lambda i: (i, 0)),            # x
                    pl.BlockSpec((d_in, M), lambda i: (0, 0)),             # W0^T
                    pl.BlockSpec((1, M), lambda i: (0, 0)),                # b0
                    pl.BlockSpec((L, d_in, 4 * M), lambda i: (0, 0, 0)),   # [Uz|Ug|Ur|Uh]
                    pl.BlockSpec((L, M, 3 * M), lambda i: (0, 0, 0)),      # [Wz|Wg|Wr]
                    pl.BlockSpec((L, 1, 3 * M), lambda i: (0, 0, 0)),      # [bz|bg|br]
                    pl.BlockSpec((L, M, M), lambda i: (0, 0, 0)),          # Wh
                    pl.BlockSpec((L, 1, M), lambda i: (0, 0, 0)),          # bh
                    pl.BlockSpec((M, d_out), lambda i: (0, 0)),            # W1^T
                    pl.BlockSpec((1, d_out), lambda i: (0, 0)),            # b1
                ],
                out_specs=pl.BlockSpec((tn, d_out), lambda i: (i, 0)),
                scratch_shapes=[],
            ),
            compiler_params=pltpu.CompilerParams(
                dimension_semantics=("parallel",),
                vmem_limit_bytes=vmem_limit),
            cost_estimate=cost,
        )(xp, *weights)
    else:
        # Streamed: per-layer weight slabs, double-buffered over the l axis.
        layer_bytes = (d_in * 4 * M + M * 3 * M + M * M) * itemsize + 4 * M * 4
        block_bytes = (2 * layer_bytes + act_bytes
                       + (d_in * M + M * d_out) * itemsize + (M + d_out) * 4
                       + tn * M * 4)
        vmem_limit = int(min(64 * 1024 * 1024,
                             max(32 * 1024 * 1024, 2 * block_bytes)))
        grid = (Np // tn, L)
        out = pl.pallas_call(
            functools.partial(_dgm_streamed_kernel, M=M),
            out_shape=out_shape,
            grid_spec=pltpu.PrefetchScalarGridSpec(
                num_scalar_prefetch=0,
                grid=grid,
                in_specs=[
                    pl.BlockSpec((tn, d_in), lambda i, l: (i, 0)),           # x
                    pl.BlockSpec((d_in, M), lambda i, l: (0, 0)),            # W0^T
                    pl.BlockSpec((1, M), lambda i, l: (0, 0)),               # b0
                    pl.BlockSpec((1, d_in, 4 * M), lambda i, l: (l, 0, 0)),  # [Uz|Ug|Ur|Uh]
                    pl.BlockSpec((1, M, 3 * M), lambda i, l: (l, 0, 0)),     # [Wz|Wg|Wr]
                    pl.BlockSpec((1, 1, 3 * M), lambda i, l: (l, 0, 0)),     # [bz|bg|br]
                    pl.BlockSpec((1, M, M), lambda i, l: (l, 0, 0)),         # Wh
                    pl.BlockSpec((1, 1, M), lambda i, l: (l, 0, 0)),         # bh
                    pl.BlockSpec((M, d_out), lambda i, l: (0, 0)),           # W1^T
                    pl.BlockSpec((1, d_out), lambda i, l: (0, 0)),           # b1
                ],
                out_specs=pl.BlockSpec((tn, d_out), lambda i, l: (i, 0)),
                scratch_shapes=[pltpu.VMEM((tn, M), jnp.float32)],           # S carry
            ),
            compiler_params=pltpu.CompilerParams(
                dimension_semantics=("parallel", "arbitrary"),
                vmem_limit_bytes=vmem_limit),
            cost_estimate=cost,
        )(xp, *weights)

    out = out[:N]
    if d_out == 1:
        out = jnp.squeeze(out, axis=-1)   # matches .squeeze_(-1) in torch
    return out


# ----------------------------------------------------------------------------
# Synthetic params & pure-JAX reference
# ----------------------------------------------------------------------------

def init_params(key, d_in, d_out, M, L):
    """Deterministic synthetic parameters (shapes match the torch module)."""
    ks = jax.random.split(key, 7)
    scale = 0.1
    # Linear(d_in, M): weight [M, d_in]; we store transposed [d_in, M].
    W0t = scale * jax.random.normal(ks[0], (d_in, M), jnp.float32)
    b0 = scale * jax.random.normal(ks[1], (1, M), jnp.float32)
    # Per layer l, gates ordered (z, g, r, h):
    U_all = scale * jax.random.normal(ks[2], (L, 4, d_in, M), jnp.float32)   # no bias
    W_all = scale * jax.random.normal(ks[3], (L, 4, M, M), jnp.float32)
    B_all = scale * jax.random.normal(ks[4], (L, 4, 1, M), jnp.float32)
    # Linear(M, d_out)
    W1t = scale * jax.random.normal(ks[5], (M, d_out), jnp.float32)
    b1 = scale * jax.random.normal(ks[6], (1, d_out), jnp.float32)
    return (W0t, b0, U_all, W_all, B_all, W1t, b1)


def reference_forward(x, params, L):
    """Pure-JAX reference mirroring the PyTorch forward exactly (per-gate)."""
    W0t, b0, U_all, W_all, B_all, W1t, b1 = params
    X = x
    S = jnp.tanh(X @ W0t + b0)
    for l in range(L):
        Z = jnp.tanh(X @ U_all[l, 0] + S @ W_all[l, 0] + B_all[l, 0])
        G = jnp.tanh(X @ U_all[l, 1] + S @ W_all[l, 1] + B_all[l, 1])
        R = jnp.tanh(X @ U_all[l, 2] + S @ W_all[l, 2] + B_all[l, 2])
        H = jnp.tanh(X @ U_all[l, 3] + (S * R) @ W_all[l, 3] + B_all[l, 3])
        S = (1.0 - G) * H + Z * S
    out = S @ W1t + b1
    return jnp.squeeze(out, -1) if out.shape[-1] == 1 else out


if __name__ == "__main__":
    # Small shapes consistent with the module: X is [N, d_in]; hidden width M.
    N, d_in, d_out, M, L = 16, 4, 1, 32, 3

    key = jax.random.PRNGKey(0)
    kx, kp = jax.random.split(key)
    x = jax.random.normal(kx, (N, d_in), jnp.float32)
    params = init_params(kp, d_in, d_out, M, L)

    y_ref = reference_forward(x, params, L)

    # f32, resident mode (auto picks this at these sizes): tight match.
    y_res = resnet_like_dgm_forward(x, params, tile_n=256, mode="resident")
    y_res = jax.block_until_ready(y_res)
    assert y_res.shape == (N,), y_res.shape
    assert jnp.max(jnp.abs(y_res - y_ref)) < 1e-4, "f32 resident kernel mismatch"

    # f32, streamed mode (layer-weight streaming path): tight match.
    y_str = resnet_like_dgm_forward(x, params, tile_n=256, mode="streamed")
    y_str = jax.block_until_ready(y_str)
    assert y_str.shape == (N,), y_str.shape
    assert jnp.max(jnp.abs(y_str - y_ref)) < 1e-4, "f32 streamed kernel mismatch"

    # bf16 weights/matmul inputs (f32 accumulation + f32 gating math): looser check.
    y_bf16 = resnet_like_dgm_forward(x, params, tile_n=256,
                                     weight_dtype=jnp.bfloat16, mode="auto")
    y_bf16 = jax.block_until_ready(y_bf16)
    assert jnp.max(jnp.abs(y_bf16 - y_ref)) < 5e-2, "bf16 kernel mismatch vs reference"

    print("KERNEL_OK")
</pallas_src>

<mosaic_0001>
module attributes {stable_mosaic.version = 11 : i64} {
  func.func @_dgm_resident_kernel(%arg0: i32, %arg1: memref<16x4xf32, #tpu.memory_space<vmem>>, %arg2: memref<4x32xf32, #tpu.memory_space<vmem>>, %arg3: memref<1x32xf32, #tpu.memory_space<vmem>>, %arg4: memref<3x4x128xf32, #tpu.memory_space<vmem>>, %arg5: memref<3x32x96xf32, #tpu.memory_space<vmem>>, %arg6: memref<3x1x96xf32, #tpu.memory_space<vmem>>, %arg7: memref<3x32x32xf32, #tpu.memory_space<vmem>>, %arg8: memref<3x1x32xf32, #tpu.memory_space<vmem>>, %arg9: memref<32x1xf32, #tpu.memory_space<vmem>>, %arg10: memref<1x1xf32, #tpu.memory_space<vmem>>, %arg11: memref<16x1xf32, #tpu.memory_space<vmem>>) attributes {dimension_semantics = [#tpu.dimension_semantics<parallel>], iteration_bounds = array<i64: 1>, scalar_prefetch = 0 : i64, scratch_operands = 0 : i64, tpu.core_type = #tpu.core_type<tc>, window_params = [{transform_indices = @transform_0, window_bounds = array<i64: 16, 4>}, {pipeline_mode = #tpu.pipeline_mode<synchronous>, transform_indices = @transform_1, window_bounds = array<i64: 4, 32>}, {pipeline_mode = #tpu.pipeline_mode<synchronous>, transform_indices = @transform_2, window_bounds = array<i64: 1, 32>}, {pipeline_mode = #tpu.pipeline_mode<synchronous>, transform_indices = @transform_3, window_bounds = array<i64: 3, 4, 128>}, {pipeline_mode = #tpu.pipeline_mode<synchronous>, transform_indices = @transform_4, window_bounds = array<i64: 3, 32, 96>}, {pipeline_mode = #tpu.pipeline_mode<synchronous>, transform_indices = @transform_5, window_bounds = array<i64: 3, 1, 96>}, {pipeline_mode = #tpu.pipeline_mode<synchronous>, transform_indices = @transform_6, window_bounds = array<i64: 3, 32, 32>}, {pipeline_mode = #tpu.pipeline_mode<synchronous>, transform_indices = @transform_7, window_bounds = array<i64: 3, 1, 32>}, {pipeline_mode = #tpu.pipeline_mode<synchronous>, transform_indices = @transform_8, window_bounds = array<i64: 32, 1>}, {pipeline_mode = #tpu.pipeline_mode<synchronous>, transform_indices = @transform_9, window_bounds = array<i64: 1, 1>}, {transform_indices = @transform_10, window_bounds = array<i64: 16, 1>}]} {
    %c0 = arith.constant 0 : index
    %c0_0 = arith.constant 0 : index
    %0 = vector.load %arg1[%c0, %c0_0] : memref<16x4xf32, #tpu.memory_space<vmem>>, vector<16x4xf32>
    %c0_1 = arith.constant 0 : index
    %c0_2 = arith.constant 0 : index
    %1 = vector.load %arg2[%c0_1, %c0_2] : memref<4x32xf32, #tpu.memory_space<vmem>>, vector<4x32xf32>
    %cst = arith.constant dense<0.000000e+00> : vector<16x32xf32>
    %2 = tpu.matmul %0, %1, %cst {dimension_numbers = #tpu.dot_dimension_numbers<[1], [0], [0], [1], [0, 0, 1, 1], [], []>} : vector<16x4xf32>, vector<4x32xf32>, vector<16x32xf32> -> vector<16x32xf32>
    %c0_3 = arith.constant 0 : index
    %c0_4 = arith.constant 0 : index
    %3 = vector.load %arg3[%c0_3, %c0_4] : memref<1x32xf32, #tpu.memory_space<vmem>>, vector<1x32xf32>
    %4 = vector.broadcast %3 : vector<1x32xf32> to vector<16x32xf32>
    %5 = arith.addf %2, %4 : vector<16x32xf32>
    %6 = math.tanh %5 : vector<16x32xf32>
    %c0_5 = arith.constant 0 : index
    %c0_6 = arith.constant 0 : index
    %c0_7 = arith.constant 0 : index
    %7 = vector.load %arg4[%c0_5, %c0_6, %c0_7] : memref<3x4x128xf32, #tpu.memory_space<vmem>>, vector<1x4x128xf32>
    %8 = vector.shape_cast %7 : vector<1x4x128xf32> to vector<4x128xf32>
    %c0_8 = arith.constant 0 : index
    %c0_9 = arith.constant 0 : index
    %c0_10 = arith.constant 0 : index
    %9 = vector.load %arg5[%c0_8, %c0_9, %c0_10] : memref<3x32x96xf32, #tpu.memory_space<vmem>>, vector<1x32x96xf32>
    %10 = vector.shape_cast %9 : vector<1x32x96xf32> to vector<32x96xf32>
    %c0_11 = arith.constant 0 : index
    %c0_12 = arith.constant 0 : index
    %c0_13 = arith.constant 0 : index
    %11 = vector.load %arg6[%c0_11, %c0_12, %c0_13] : memref<3x1x96xf32, #tpu.memory_space<vmem>>, vector<1x1x96xf32>
    %12 = vector.shape_cast %11 : vector<1x1x96xf32> to vector<1x96xf32>
    %c0_14 = arith.constant 0 : index
    %c0_15 = arith.constant 0 : index
    %c0_16 = arith.constant 0 : index
    %13 = vector.load %arg7[%c0_14, %c0_15, %c0_16] : memref<3x32x32xf32, #tpu.memory_space<vmem>>, vector<1x32x32xf32>
    %14 = vector.shape_cast %13 : vector<1x32x32xf32> to vector<32x32xf32>
    %c0_17 = arith.constant 0 : index
    %c0_18 = arith.constant 0 : index
    %c0_19 = arith.constant 0 : index
    %15 = vector.load %arg8[%c0_17, %c0_18, %c0_19] : memref<3x1x32xf32, #tpu.memory_space<vmem>>, vector<1x1x32xf32>
    %16 = vector.shape_cast %15 : vector<1x1x32xf32> to vector<1x32xf32>
    %cst_20 = arith.constant dense<0.000000e+00> : vector<16x128xf32>
    %17 = tpu.matmul %0, %8, %cst_20 {dimension_numbers = #tpu.dot_dimension_numbers<[1], [0], [0], [1], [0, 0, 1, 1], [], []>} : vector<16x4xf32>, vector<4x128xf32>, vector<16x128xf32> -> vector<16x128xf32>
    %18 = vector.extract_strided_slice %17 {offsets = [0, 0], sizes = [16, 96], strides = [1, 1]} : vector<16x128xf32> to vector<16x96xf32>
    %cst_21 = arith.constant dense<0.000000e+00> : vector<16x96xf32>
    %19 = tpu.matmul %6, %10, %cst_21 {dimension_numbers = #tpu.dot_dimension_numbers<[1], [0], [0], [1], [0, 0, 1, 1], [], []>} : vector<16x32xf32>, vector<32x96xf32>, vector<16x96xf32> -> vector<16x96xf32>
    %20 = arith.addf %18, %19 : vector<16x96xf32>
    %21 = vector.broadcast %12 : vector<1x96xf32> to vector<16x96xf32>
    %22 = arith.addf %20, %21 : vector<16x96xf32>
    %23 = math.tanh %22 : vector<16x96xf32>
    %24 = vector.extract_strided_slice %23 {offsets = [0, 0], sizes = [16, 32], strides = [1, 1]} : vector<16x96xf32> to vector<16x32xf32>
    %25 = vector.extract_strided_slice %23 {offsets = [0, 32], sizes = [16, 32], strides = [1, 1]} : vector<16x96xf32> to vector<16x32xf32>
    %26 = vector.extract_strided_slice %23 {offsets = [0, 64], sizes = [16, 32], strides = [1, 1]} : vector<16x96xf32> to vector<16x32xf32>
    %27 = vector.extract_strided_slice %17 {offsets = [0, 96], sizes = [16, 32], strides = [1, 1]} : vector<16x128xf32> to vector<16x32xf32>
    %28 = arith.mulf %6, %26 : vector<16x32xf32>
    %cst_22 = arith.constant dense<0.000000e+00> : vector<16x32xf32>
    %29 = tpu.matmul %28, %14, %cst_22 {dimension_numbers = #tpu.dot_dimension_numbers<[1], [0], [0], [1], [0, 0, 1, 1], [], []>} : vector<16x32xf32>, vector<32x32xf32>, vector<16x32xf32> -> vector<16x32xf32>
    %30 = arith.addf %27, %29 : vector<16x32xf32>
    %31 = vector.broadcast %16 : vector<1x32xf32> to vector<16x32xf32>
    %32 = arith.addf %30, %31 : vector<16x32xf32>
    %33 = math.tanh %32 : vector<16x32xf32>
    %cst_23 = arith.constant 1.000000e+00 : f32
    %34 = vector.broadcast %cst_23 : f32 to vector<16x32xf32>
    %35 = arith.subf %34, %25 : vector<16x32xf32>
    %36 = arith.mulf %35, %33 : vector<16x32xf32>
    %37 = arith.mulf %24, %6 : vector<16x32xf32>
    %38 = arith.addf %36, %37 : vector<16x32xf32>
    %c1 = arith.constant 1 : index
    %c0_24 = arith.constant 0 : index
    %c0_25 = arith.constant 0 : index
    %39 = vector.load %arg4[%c1, %c0_24, %c0_25] : memref<3x4x128xf32, #tpu.memory_space<vmem>>, vector<1x4x128xf32>
    %40 = vector.shape_cast %39 : vector<1x4x128xf32> to vector<4x128xf32>
    %c1_26 = arith.constant 1 : index
    %c0_27 = arith.constant 0 : index
    %c0_28 = arith.constant 0 : index
    %41 = vector.load %arg5[%c1_26, %c0_27, %c0_28] : memref<3x32x96xf32, #tpu.memory_space<vmem>>, vector<1x32x96xf32>
    %42 = vector.shape_cast %41 : vector<1x32x96xf32> to vector<32x96xf32>
    %c1_29 = arith.constant 1 : index
    %c0_30 = arith.constant 0 : index
    %c0_31 = arith.constant 0 : index
    %43 = vector.load %arg6[%c1_29, %c0_30, %c0_31] : memref<3x1x96xf32, #tpu.memory_space<vmem>>, vector<1x1x96xf32>
    %44 = vector.shape_cast %43 : vector<1x1x96xf32> to vector<1x96xf32>
    %c1_32 = arith.constant 1 : index
    %c0_33 = arith.constant 0 : index
    %c0_34 = arith.constant 0 : index
    %45 = vector.load %arg7[%c1_32, %c0_33, %c0_34] : memref<3x32x32xf32, #tpu.memory_space<vmem>>, vector<1x32x32xf32>
    %46 = vector.shape_cast %45 : vector<1x32x32xf32> to vector<32x32xf32>
    %c1_35 = arith.constant 1 : index
    %c0_36 = arith.constant 0 : index
    %c0_37 = arith.constant 0 : index
    %47 = vector.load %arg8[%c1_35, %c0_36, %c0_37] : memref<3x1x32xf32, #tpu.memory_space<vmem>>, vector<1x1x32xf32>
    %48 = vector.shape_cast %47 : vector<1x1x32xf32> to vector<1x32xf32>
    %cst_38 = arith.constant dense<0.000000e+00> : vector<16x128xf32>
    %49 = tpu.matmul %0, %40, %cst_38 {dimension_numbers = #tpu.dot_dimension_numbers<[1], [0], [0], [1], [0, 0, 1, 1], [], []>} : vector<16x4xf32>, vector<4x128xf32>, vector<16x128xf32> -> vector<16x128xf32>
    %50 = vector.extract_strided_slice %49 {offsets = [0, 0], sizes = [16, 96], strides = [1, 1]} : vector<16x128xf32> to vector<16x96xf32>
    %cst_39 = arith.constant dense<0.000000e+00> : vector<16x96xf32>
    %51 = tpu.matmul %38, %42, %cst_39 {dimension_numbers = #tpu.dot_dimension_numbers<[1], [0], [0], [1], [0, 0, 1, 1], [], []>} : vector<16x32xf32>, vector<32x96xf32>, vector<16x96xf32> -> vector<16x96xf32>
    %52 = arith.addf %50, %51 : vector<16x96xf32>
    %53 = vector.broadcast %44 : vector<1x96xf32> to vector<16x96xf32>
    %54 = arith.addf %52, %53 : vector<16x96xf32>
    %55 = math.tanh %54 : vector<16x96xf32>
    %56 = vector.extract_strided_slice %55 {offsets = [0, 0], sizes = [16, 32], strides = [1, 1]} : vector<16x96xf32> to vector<16x32xf32>
    %57 = vector.extract_strided_slice %55 {offsets = [0, 32], sizes = [16, 32], strides = [1, 1]} : vector<16x96xf32> to vector<16x32xf32>
    %58 = vector.extract_strided_slice %55 {offsets = [0, 64], sizes = [16, 32], strides = [1, 1]} : vector<16x96xf32> to vector<16x32xf32>
    %59 = vector.extract_strided_slice %49 {offsets = [0, 96], sizes = [16, 32], strides = [1, 1]} : vector<16x128xf32> to vector<16x32xf32>
    %60 = arith.mulf %38, %58 : vector<16x32xf32>
    %cst_40 = arith.constant dense<0.000000e+00> : vector<16x32xf32>
    %61 = tpu.matmul %60, %46, %cst_40 {dimension_numbers = #tpu.dot_dimension_numbers<[1], [0], [0], [1], [0, 0, 1, 1], [], []>} : vector<16x32xf32>, vector<32x32xf32>, vector<16x32xf32> -> vector<16x32xf32>
    %62 = arith.addf %59, %61 : vector<16x32xf32>
    %63 = vector.broadcast %48 : vector<1x32xf32> to vector<16x32xf32>
    %64 = arith.addf %62, %63 : vector<16x32xf32>
    %65 = math.tanh %64 : vector<16x32xf32>
    %cst_41 = arith.constant 1.000000e+00 : f32
    %66 = vector.broadcast %cst_41 : f32 to vector<16x32xf32>
    %67 = arith.subf %66, %57 : vector<16x32xf32>
    %68 = arith.mulf %67, %65 : vector<16x32xf32>
    %69 = arith.mulf %56, %38 : vector<16x32xf32>
    %70 = arith.addf %68, %69 : vector<16x32xf32>
    %c2 = arith.constant 2 : index
    %c0_42 = arith.constant 0 : index
    %c0_43 = arith.constant 0 : index
    %71 = vector.load %arg4[%c2, %c0_42, %c0_43] : memref<3x4x128xf32, #tpu.memory_space<vmem>>, vector<1x4x128xf32>
    %72 = vector.shape_cast %71 : vector<1x4x128xf32> to vector<4x128xf32>
    %c2_44 = arith.constant 2 : index
    %c0_45 = arith.constant 0 : index
    %c0_46 = arith.constant 0 : index
    %73 = vector.load %arg5[%c2_44, %c0_45, %c0_46] : memref<3x32x96xf32, #tpu.memory_space<vmem>>, vector<1x32x96xf32>
    %74 = vector.shape_cast %73 : vector<1x32x96xf32> to vector<32x96xf32>
    %c2_47 = arith.constant 2 : index
    %c0_48 = arith.constant 0 : index
    %c0_49 = arith.constant 0 : index
    %75 = vector.load %arg6[%c2_47, %c0_48, %c0_49] : memref<3x1x96xf32, #tpu.memory_space<vmem>>, vector<1x1x96xf32>
    %76 = vector.shape_cast %75 : vector<1x1x96xf32> to vector<1x96xf32>
    %c2_50 = arith.constant 2 : index
    %c0_51 = arith.constant 0 : index
    %c0_52 = arith.constant 0 : index
    %77 = vector.load %arg7[%c2_50, %c0_51, %c0_52] : memref<3x32x32xf32, #tpu.memory_space<vmem>>, vector<1x32x32xf32>
    %78 = vector.shape_cast %77 : vector<1x32x32xf32> to vector<32x32xf32>
    %c2_53 = arith.constant 2 : index
    %c0_54 = arith.constant 0 : index
    %c0_55 = arith.constant 0 : index
    %79 = vector.load %arg8[%c2_53, %c0_54, %c0_55] : memref<3x1x32xf32, #tpu.memory_space<vmem>>, vector<1x1x32xf32>
    %80 = vector.shape_cast %79 : vector<1x1x32xf32> to vector<1x32xf32>
    %cst_56 = arith.constant dense<0.000000e+00> : vector<16x128xf32>
    %81 = tpu.matmul %0, %72, %cst_56 {dimension_numbers = #tpu.dot_dimension_numbers<[1], [0], [0], [1], [0, 0, 1, 1], [], []>} : vector<16x4xf32>, vector<4x128xf32>, vector<16x128xf32> -> vector<16x128xf32>
    %82 = vector.extract_strided_slice %81 {offsets = [0, 0], sizes = [16, 96], strides = [1, 1]} : vector<16x128xf32> to vector<16x96xf32>
    %cst_57 = arith.constant dense<0.000000e+00> : vector<16x96xf32>
    %83 = tpu.matmul %70, %74, %cst_57 {dimension_numbers = #tpu.dot_dimension_numbers<[1], [0], [0], [1], [0, 0, 1, 1], [], []>} : vector<16x32xf32>, vector<32x96xf32>, vector<16x96xf32> -> vector<16x96xf32>
    %84 = arith.addf %82, %83 : vector<16x96xf32>
    %85 = vector.broadcast %76 : vector<1x96xf32> to vector<16x96xf32>
    %86 = arith.addf %84, %85 : vector<16x96xf32>
    %87 = math.tanh %86 : vector<16x96xf32>
    %88 = vector.extract_strided_slice %87 {offsets = [0, 0], sizes = [16, 32], strides = [1, 1]} : vector<16x96xf32> to vector<16x32xf32>
    %89 = vector.extract_strided_slice %87 {offsets = [0, 32], sizes = [16, 32], strides = [1, 1]} : vector<16x96xf32> to vector<16x32xf32>
    %90 = vector.extract_strided_slice %87 {offsets = [0, 64], sizes = [16, 32], strides = [1, 1]} : vector<16x96xf32> to vector<16x32xf32>
    %91 = vector.extract_strided_slice %81 {offsets = [0, 96], sizes = [16, 32], strides = [1, 1]} : vector<16x128xf32> to vector<16x32xf32>
    %92 = arith.mulf %70, %90 : vector<16x32xf32>
    %cst_58 = arith.constant dense<0.000000e+00> : vector<16x32xf32>
    %93 = tpu.matmul %92, %78, %cst_58 {dimension_numbers = #tpu.dot_dimension_numbers<[1], [0], [0], [1], [0, 0, 1, 1], [], []>} : vector<16x32xf32>, vector<32x32xf32>, vector<16x32xf32> -> vector<16x32xf32>
    %94 = arith.addf %91, %93 : vector<16x32xf32>
    %95 = vector.broadcast %80 : vector<1x32xf32> to vector<16x32xf32>
    %96 = arith.addf %94, %95 : vector<16x32xf32>
    %97 = math.tanh %96 : vector<16x32xf32>
    %cst_59 = arith.constant 1.000000e+00 : f32
    %98 = vector.broadcast %cst_59 : f32 to vector<16x32xf32>
    %99 = arith.subf %98, %89 : vector<16x32xf32>
    %100 = arith.mulf %99, %97 : vector<16x32xf32>
    %101 = arith.mulf %88, %70 : vector<16x32xf32>
    %102 = arith.addf %100, %101 : vector<16x32xf32>
    %c0_60 = arith.constant 0 : index
    %c0_61 = arith.constant 0 : index
    %103 = vector.load %arg9[%c0_60, %c0_61] : memref<32x1xf32, #tpu.memory_space<vmem>>, vector<32x1xf32>
    %cst_62 = arith.constant dense<0.000000e+00> : vector<16x1xf32>
    %104 = tpu.matmul %102, %103, %cst_62 {dimension_numbers = #tpu.dot_dimension_numbers<[1], [0], [0], [1], [0, 0, 1, 1], [], []>} : vector<16x32xf32>, vector<32x1xf32>, vector<16x1xf32> -> vector<16x1xf32>
    %c0_63 = arith.constant 0 : index
    %c0_64 = arith.constant 0 : index
    %105 = vector.load %arg10[%c0_63, %c0_64] : memref<1x1xf32, #tpu.memory_space<vmem>>, vector<1x1xf32>
    %106 = vector.broadcast %105 : vector<1x1xf32> to vector<16x1xf32>
    %107 = arith.addf %104, %106 : vector<16x1xf32>
    %c0_65 = arith.constant 0 : index
    %c0_66 = arith.constant 0 : index
    %108 = vector.load %arg11[%c0_65, %c0_66] : memref<16x1xf32, #tpu.memory_space<vmem>>, vector<16x1xf32>
    tpu.vector_store %arg11[%c0_65, %c0_66], %107 {strides = array<i32>} : memref<16x1xf32, #tpu.memory_space<vmem>>, vector<16x1xf32>,
    return
  }
  func.func @transform_0(%arg0: i32) -> (i32, i32) {
    %c0_i32 = arith.constant 0 : i32
    %c0_i32_0 = arith.constant 0 : i32
    return %arg0, %c0_i32 : i32, i32
  }
  func.func @transform_1(%arg0: i32) -> (i32, i32) {
    %c0_i32 = arith.constant 0 : i32
    %c0_i32_0 = arith.constant 0 : i32
    %c0_i32_1 = arith.constant 0 : i32
    return %c0_i32, %c0_i32_0 : i32, i32
  }
  func.func @transform_2(%arg0: i32) -> (i32, i32) {
    %c0_i32 = arith.constant 0 : i32
    %c0_i32_0 = arith.constant 0 : i32
    %c0_i32_1 = arith.constant 0 : i32
    return %c0_i32, %c0_i32_0 : i32, i32
  }
  func.func @transform_3(%arg0: i32) -> (i32, i32, i32) {
    %c0_i32 = arith.constant 0 : i32
    %c0_i32_0 = arith.constant 0 : i32
    %c0_i32_1 = arith.constant 0 : i32
    %c0_i32_2 = arith.constant 0 : i32
    return %c0_i32, %c0_i32_0, %c0_i32_1 : i32, i32, i32
  }
  func.func @transform_4(%arg0: i32) -> (i32, i32, i32) {
    %c0_i32 = arith.constant 0 : i32
    %c0_i32_0 = arith.constant 0 : i32
    %c0_i32_1 = arith.constant 0 : i32
    %c0_i32_2 = arith.constant 0 : i32
    return %c0_i32, %c0_i32_0, %c0_i32_1 : i32, i32, i32
  }
  func.func @transform_5(%arg0: i32) -> (i32, i32, i32) {
    %c0_i32 = arith.constant 0 : i32
    %c0_i32_0 = arith.constant 0 : i32
    %c0_i32_1 = arith.constant 0 : i32
    %c0_i32_2 = arith.constant 0 : i32
    return %c0_i32, %c0_i32_0, %c0_i32_1 : i32, i32, i32
  }
  func.func @transform_6(%arg0: i32) -> (i32, i32, i32) {
    %c0_i32 = arith.constant 0 : i32
    %c0_i32_0 = arith.constant 0 : i32
    %c0_i32_1 = arith.constant 0 : i32
    %c0_i32_2 = arith.constant 0 : i32
    return %c0_i32, %c0_i32_0, %c0_i32_1 : i32, i32, i32
  }
  func.func @transform_7(%arg0: i32) -> (i32, i32, i32) {
    %c0_i32 = arith.constant 0 : i32
    %c0_i32_0 = arith.constant 0 : i32
    %c0_i32_1 = arith.constant 0 : i32
    %c0_i32_2 = arith.constant 0 : i32
    return %c0_i32, %c0_i32_0, %c0_i32_1 : i32, i32, i32
  }
  func.func @transform_8(%arg0: i32) -> (i32, i32) {
    %c0_i32 = arith.constant 0 : i32
    %c0_i32_0 = arith.constant 0 : i32
    %c0_i32_1 = arith.constant 0 : i32
    return %c0_i32, %c0_i32_0 : i32, i32
  }
  func.func @transform_9(%arg0: i32) -> (i32, i32) {
    %c0_i32 = arith.constant 0 : i32
    %c0_i32_0 = arith.constant 0 : i32
    %c0_i32_1 = arith.constant 0 : i32
    return %c0_i32, %c0_i32_0 : i32, i32
  }
  func.func @transform_10(%arg0: i32) -> (i32, i32) {
    %c0_i32 = arith.constant 0 : i32
    %c0_i32_0 = arith.constant 0 : i32
    return %arg0, %c0_i32 : i32, i32
  }
}

</mosaic_0001>

<llo_original>
// kernel: tpu_custom_call.1
$region0: #{tpu_custom_call.1}
  #allocation0 [shape = 'u32[]', space=smem, size = 0x4, offset = 0x4, fixed_abs, tag = 'smem constant byte address 0x4 - core index']
  #allocation1 [shape = 'u32[144,128]{1,0:T(1,128)}', space=vmem, size = 0x12000, scoped, tag = 'internal scratch']
  #allocation2 [shape = 'f32[1,1]{1,0:T(1,128)S(1)}', space=vmem, size = 0x200, scoped, tag = 'scoped memory for tpu_custom_call.1']
  %s0 = inlined_call_operand.vmem [shape: f32[16,4], index: 0, kind: input, shape index: {}]
  %s1 = inlined_call_operand.vmem [shape: f32[4,32], index: 1, kind: input, shape index: {}]
  %s2 = inlined_call_operand.vmem [shape: f32[1,32], index: 2, kind: input, shape index: {}]
  %s3 = inlined_call_operand.vmem [shape: f32[3,4,128], index: 3, kind: input, shape index: {}]
  %s4 = inlined_call_operand.hbm [shape: f32[3,32,96], index: 4, kind: input, shape index: {}]
  %s5 = inlined_call_operand.vmem [shape: f32[3,1,96], index: 5, kind: input, shape index: {}]
  %s6 = inlined_call_operand.hbm [shape: f32[3,32,32], index: 6, kind: input, shape index: {}]
  %s7 = inlined_call_operand.vmem [shape: f32[3,1,32], index: 7, kind: input, shape index: {}]
  %s8 = inlined_call_operand.vmem [shape: f32[32,1], index: 8, kind: input, shape index: {}]
  %s9 = inlined_call_operand.<no memory space> [shape: f32[1,1], index: 9, kind: input, shape index: {}]
  %s10 = inlined_call_operand.vmem [shape: f32[16,1], index: 10, kind: output, shape index: {}]
  %s11 = sld [smem:[#allocation0]]
  $region58: #{tpu_custom_call.1} parent=0
    _
  %s13 = ssub.s32 1, %s11
  %s14 = scalar_select 0, %s13, %s11
  %v15 = vstv %s9
  %16 = vst [vmem:[#allocation2] sm:$0x1] %v15
  $region1: #{tpu_custom_call.1} parent=0
    #allocation3 [shape = 'u8[49152]{0}', space=vmem, size = 0xc000, scoped, tag = 'input window, operand 4, single buffered']
    #allocation4 [shape = 's32[1]{0}', space=sflag, size = 0x4, scoped, tag = 'scoped memory for tpu_custom_call.1']
    #allocation5 [shape = 'u8[49152]{0}', space=vmem, size = 0xc000, scoped, tag = 'input window, operand 6, single buffered']
    #allocation6 [shape = 's32[1]{0}', space=sflag, size = 0x4, scoped, tag = 'scoped memory for tpu_custom_call.1']
    %17 = vsyncpa [#allocation4], 0
    %18 = vsyncpa [#allocation6], 0
    // Predicated region
    $region2: #{tpu_custom_call.1} parent=1 // pred_check
      _
    $region3: #{tpu_custom_call.1} parent=1 // pred_check_branch
      %20 = sbr.rel (0) target = $region5
    $region4: #{tpu_custom_call.1} parent=1 // pred_region
      _
    $region5: #{tpu_custom_call.1} parent=1 // pred_fallthru
      _
    // Predicated region
    $region6: #{tpu_custom_call.1} parent=1 // pred_check
      _
    $region7: #{tpu_custom_call.1} parent=1 // pred_check_branch
      %22 = sbr.rel (0) target = $region9
    $region8: #{tpu_custom_call.1} parent=1 // pred_region
      _
    $region9: #{tpu_custom_call.1} parent=1 // pred_fallthru
      _
    // Predicated region
    $region10: #{tpu_custom_call.1} parent=1 // pred_check
      _
    $region11: #{tpu_custom_call.1} parent=1 // pred_check_branch
      %24 = sbr.rel (0) target = $region13
    $region12: #{tpu_custom_call.1} parent=1 // pred_region
      _
    $region13: #{tpu_custom_call.1} parent=1 // pred_fallthru
      _
    // Predicated region
    $region14: #{tpu_custom_call.1} parent=1 // pred_check
      _
    $region15: #{tpu_custom_call.1} parent=1 // pred_check_branch
      %26 = sbr.rel (0) target = $region17
    $region16: #{tpu_custom_call.1} parent=1 // pred_region
      _
    $region17: #{tpu_custom_call.1} parent=1 // pred_fallthru
      _
    // Predicated region
    $region18: #{tpu_custom_call.1} parent=1 // pred_check
      _
    $region19: #{tpu_custom_call.1} parent=1 // pred_check_branch
      %28 = sbr.rel (0) target = $region21
    $region20: #{tpu_custom_call.1} parent=1 // pred_region
      %s30 = ssub.s32 1536, 1536
      %31 = vsyncadd [#allocation4], %s30
      %s32 = sshll.u32 [#allocation3], 4
      %s33 = int_to_ptr.vmem [resolvable:$true] %s32
      %38 = dma.hbm_to_vmem [thread:$0]  %s4, 1536, %s33, [#allocation4], 128, 128, 8
    $region21: #{tpu_custom_call.1} parent=1 // pred_fallthru
      _
    // Predicated region
    $region22: #{tpu_custom_call.1} parent=1 // pred_check
      _
    $region23: #{tpu_custom_call.1} parent=1 // pred_check_branch
      %40 = sbr.rel (0) target = $region25
    $region24: #{tpu_custom_call.1} parent=1 // pred_region
      _
    $region25: #{tpu_custom_call.1} parent=1 // pred_fallthru
      _
    // Predicated region
    $region26: #{tpu_custom_call.1} parent=1 // pred_check
      _
    $region27: #{tpu_custom_call.1} parent=1 // pred_check_branch
      %42 = sbr.rel (0) target = $region29
    $region28: #{tpu_custom_call.1} parent=1 // pred_region
      %s44 = ssub.s32 1536, 1536
      %45 = vsyncadd [#allocation6], %s44
      %s46 = sshll.u32 [#allocation5], 4
      %s47 = int_to_ptr.vmem [resolvable:$true] %s46
      %52 = dma.hbm_to_vmem [thread:$0]  %s6, 1536, %s47, [#allocation6], 128, 128, 8
    $region29: #{tpu_custom_call.1} parent=1 // pred_fallthru
      _
    // Predicated region
    $region30: #{tpu_custom_call.1} parent=1 // pred_check
      _
    $region31: #{tpu_custom_call.1} parent=1 // pred_check_branch
      %54 = sbr.rel (0) target = $region33
    $region32: #{tpu_custom_call.1} parent=1 // pred_region
      _
    $region33: #{tpu_custom_call.1} parent=1 // pred_fallthru
      _
    // Predicated region
    $region34: #{tpu_custom_call.1} parent=1 // pred_check
      _
    $region35: #{tpu_custom_call.1} parent=1 // pred_check_branch
      %56 = sbr.rel (0) target = $region37
    $region36: #{tpu_custom_call.1} parent=1 // pred_region
      _
    $region37: #{tpu_custom_call.1} parent=1 // pred_fallthru
      _
    // Predicated region
    $region38: #{tpu_custom_call.1} parent=1 // pred_check
      _
    $region39: #{tpu_custom_call.1} parent=1 // pred_check_branch
      %58 = sbr.rel (0) target = $region41
    $region40: #{tpu_custom_call.1} parent=1 // pred_region
      _
    $region41: #{tpu_custom_call.1} parent=1 // pred_fallthru
      _
    // Predicated region
    $region42: #{tpu_custom_call.1} parent=1 // pred_check
      _
    $region43: #{tpu_custom_call.1} parent=1 // pred_check_branch
      %60 = sbr.rel (0) target = $region45
    $region44: #{tpu_custom_call.1} parent=1 // pred_region
      %61 = dma.done [#allocation4], 1536
    $region45: #{tpu_custom_call.1} parent=1 // pred_fallthru
      _
    // Predicated region
    $region46: #{tpu_custom_call.1} parent=1 // pred_check
      _
    $region47: #{tpu_custom_call.1} parent=1 // pred_check_branch
      %63 = sbr.rel (0) target = $region49
    $region48: #{tpu_custom_call.1} parent=1 // pred_region
      %64 = dma.done [#allocation6], 1536
    $region49: #{tpu_custom_call.1} parent=1 // pred_fallthru
      _
    %v65 = vld [vmem:[%s0] sm:$0xff]
    %v66 = vld [vmem:[%s0 + $0x8] sm:$0xff]
    %v67 = vld [vmem:[%s1] sm:$0xf]
    %v68 = vld [vmem:[%s2] sm:$0x1]
    %v70 = vlaneseq
    %v71 = vshrl.u32 %v70, 7
    %v72 = vsub.s32 0, %v71
    %v73 = vrot.slane %v68, %v72
    %vm75 = vcmask 31744
    %v77 = vsel %vm75, %v65, 0
    %v80 = vsel %vm75, %v66, 0
    %vm82 = vcmask 1043456
    %v84 = vsel %vm82, %v67, 0
    %86 = vmatprep.subr.mxu0 0.0
    %87 = vmatpush1.msra.mxu0 0.0
    %88 = vmatprep.subr.mxu0 0.0
    %89 = vmatpush1.msra.mxu0 0.0
    %90 = vmatprep.subr.mxu0 0.0
    %91 = vmatpush1.msra.mxu0 0.0
    %92 = vmatprep.subr.mxu0 0.0
    %93 = vmatpush1.msra.mxu0 0.0
    %94 = vmatprep.subr.mxu0 0.0
    %95 = vmatpush1.msra.mxu0 0.0
    %96 = vmatprep.subr.mxu0 0.0
    %97 = vmatpush1.msra.mxu0 0.0
    %98 = vmatprep.subr.mxu0 0.0
    %99 = vmatpush1.msra.mxu0 0.0
    %100 = vmatprep.subr.mxu0 0.0
    %101 = vmatpush1.msra.mxu0 0.0
    %102 = vmatprep.subr.mxu0 0.0
    %103 = vmatpush1.msra.mxu0 0.0
    %104 = vmatprep.subr.mxu0 0.0
    %105 = vmatpush1.msra.mxu0 0.0
    %106 = vmatprep.subr.mxu0 0.0
    %107 = vmatpush1.msra.mxu0 0.0
    %108 = vmatprep.subr.mxu0 0.0
    %109 = vmatpush1.msra.mxu0 0.0
    %110 = vmatprep.subr.mxu0 0.0
    %111 = vmatpush1.msra.mxu0 0.0
    %112 = vmatprep.subr.mxu0 0.0
    %113 = vmatpush1.msra.mxu0 0.0
    %114 = vmatprep.subr.mxu0 0.0
    %115 = vmatpush1.msra.mxu0 0.0
    %116 = vmatprep.subr.mxu0 0.0
    %117 = vmatpush1.msra.mxu0 %v84
    %118 = vmatprep.subr.mxu0 0.0
    %119 = vmatpush2.msra.mxu0 0.0
    %120 = vmatprep.subr.mxu0 0.0
    %121 = vmatpush2.msra.mxu0 0.0
    %122 = vmatprep.subr.mxu0 0.0
    %123 = vmatpush2.msra.mxu0 0.0
    %124 = vmatprep.subr.mxu0 0.0
    %125 = vmatpush2.msra.mxu0 0.0
    %126 = vmatprep.subr.mxu0 0.0
    %127 = vmatpush2.msra.mxu0 0.0
    %128 = vmatprep.subr.mxu0 0.0
    %129 = vmatpush2.msra.mxu0 0.0
    %130 = vmatprep.subr.mxu0 0.0
    %131 = vmatpush2.msra.mxu0 0.0
    %132 = vmatprep.subr.mxu0 0.0
    %133 = vmatpush2.msra.mxu0 0.0
    %134 = vmatprep.subr.mxu0 0.0
    %135 = vmatpush2.msra.mxu0 0.0
    %136 = vmatprep.subr.mxu0 0.0
    %137 = vmatpush2.msra.mxu0 0.0
    %138 = vmatprep.subr.mxu0 0.0
    %139 = vmatpush2.msra.mxu0 0.0
    %140 = vmatprep.subr.mxu0 0.0
    %141 = vmatpush2.msra.mxu0 0.0
    %142 = vmatprep.subr.mxu0 0.0
    %143 = vmatpush2.msra.mxu0 0.0
    %144 = vmatprep.subr.mxu0 0.0
    %145 = vmatpush2.msra.mxu0 0.0
    %146 = vmatprep.subr.mxu0 0.0
    %147 = vmatpush2.msra.mxu0 0.0
    %148 = vmatprep.subr.mxu0 0.0
    %149 = vmatpush2.msra.mxu0 0.0
    %150 = vmatprep.mubr.f32.mxu0 0.0
    %151 = vmatmul.mubr.f32.gmra.mxu0 %v77
    %v152 = vpop.f32.mrf.mxu0
    %v153 = vadd.f32 %v73, %v152
    %v154 = vpop.f32.mrf.mxu0
    %155 = vmatprep.mubr.f32.mxu0 0.0
    %156 = vmatmul.mubr.f32.gmra.mxu0 %v80
    %v157 = vpop.f32.mrf.mxu0
    %v158 = vadd.f32 %v73, %v157
    %v159 = vpop.f32.mrf.mxu0
    %160 = vdwg.mxu0
    %v161 = vtanh.pop %v153
    %v162 = vtanh.pop %v158
    %v163 = vld [vmem:[%s3] sm:$0xf]
    %v164 = vld [vmem:[#allocation3] sm:$0xff]
    %v165 = vld [vmem:[#allocation3 + $0x8] sm:$0xff]
    %v166 = vld [vmem:[#allocation3 + $0x10] sm:$0xff]
    %v167 = vld [vmem:[#allocation3 + $0x18] sm:$0xff]
    %v168 = vld [vmem:[%s5] sm:$0x1]
    %v169 = vld [vmem:[#allocation5] sm:$0xff]
    %v170 = vld [vmem:[#allocation5 + $0x8] sm:$0xff]
    %v171 = vld [vmem:[#allocation5 + $0x10] sm:$0xff]
    %v172 = vld [vmem:[#allocation5 + $0x18] sm:$0xff]
    %v173 = vld [vmem:[%s7] sm:$0x1]
    %v175 = vsel %vm82, %v163, 0
    %177 = vmatprep.subr.mxu0 0.0
    %178 = vmatpush1.msra.mxu0 0.0
    %179 = vmatprep.subr.mxu0 0.0
    %180 = vmatpush1.msra.mxu0 0.0
    %181 = vmatprep.subr.mxu0 0.0
    %182 = vmatpush1.msra.mxu0 0.0
    %183 = vmatprep.subr.mxu0 0.0
    %184 = vmatpush1.msra.mxu0 0.0
    %185 = vmatprep.subr.mxu0 0.0
    %186 = vmatpush1.msra.mxu0 0.0
    %187 = vmatprep.subr.mxu0 0.0
    %188 = vmatpush1.msra.mxu0 0.0
    %189 = vmatprep.subr.mxu0 0.0
    %190 = vmatpush1.msra.mxu0 0.0
    %191 = vmatprep.subr.mxu0 0.0
    %192 = vmatpush1.msra.mxu0 0.0
    %193 = vmatprep.subr.mxu0 0.0
    %194 = vmatpush1.msra.mxu0 0.0
    %195 = vmatprep.subr.mxu0 0.0
    %196 = vmatpush1.msra.mxu0 0.0
    %197 = vmatprep.subr.mxu0 0.0
    %198 = vmatpush1.msra.mxu0 0.0
    %199 = vmatprep.subr.mxu0 0.0
    %200 = vmatpush1.msra.mxu0 0.0
    %201 = vmatprep.subr.mxu0 0.0
    %202 = vmatpush1.msra.mxu0 0.0
    %203 = vmatprep.subr.mxu0 0.0
    %204 = vmatpush1.msra.mxu0 0.0
    %205 = vmatprep.subr.mxu0 0.0
    %206 = vmatpush1.msra.mxu0 0.0
    %207 = vmatprep.subr.mxu0 0.0
    %208 = vmatpush1.msra.mxu0 %v175
    %209 = vmatprep.subr.mxu0 0.0
    %210 = vmatpush2.msra.mxu0 0.0
    %211 = vmatprep.subr.mxu0 0.0
    %212 = vmatpush2.msra.mxu0 0.0
    %213 = vmatprep.subr.mxu0 0.0
    %214 = vmatpush2.msra.mxu0 0.0
    %215 = vmatprep.subr.mxu0 0.0
    %216 = vmatpush2.msra.mxu0 0.0
    %217 = vmatprep.subr.mxu0 0.0
    %218 = vmatpush2.msra.mxu0 0.0
    %219 = vmatprep.subr.mxu0 0.0
    %220 = vmatpush2.msra.mxu0 0.0
    %221 = vmatprep.subr.mxu0 0.0
    %222 = vmatpush2.msra.mxu0 0.0
    %223 = vmatprep.subr.mxu0 0.0
    %224 = vmatpush2.msra.mxu0 0.0
    %225 = vmatprep.subr.mxu0 0.0
    %226 = vmatpush2.msra.mxu0 0.0
    %227 = vmatprep.subr.mxu0 0.0
    %228 = vmatpush2.msra.mxu0 0.0
    %229 = vmatprep.subr.mxu0 0.0
    %230 = vmatpush2.msra.mxu0 0.0
    %231 = vmatprep.subr.mxu0 0.0
    %232 = vmatpush2.msra.mxu0 0.0
    %233 = vmatprep.subr.mxu0 0.0
    %234 = vmatpush2.msra.mxu0 0.0
    %235 = vmatprep.subr.mxu0 0.0
    %236 = vmatpush2.msra.mxu0 0.0
    %237 = vmatprep.subr.mxu0 0.0
    %238 = vmatpush2.msra.mxu0 0.0
    %239 = vmatprep.subr.mxu0 0.0
    %240 = vmatpush2.msra.mxu0 0.0
    %241 = vmatprep.mubr.f32.mxu0 0.0
    %242 = vmatmul.mubr.f32.gmra.mxu0 %v77
    %v243 = vpop.f32.mrf.mxu0
    %v244 = vadd.f32 0.0, %v243
    %v245 = vpop.f32.mrf.mxu0
    %246 = vmatprep.mubr.f32.mxu0 0.0
    %247 = vmatmul.mubr.f32.gmra.mxu0 %v80
    %v248 = vpop.f32.mrf.mxu0
    %v249 = vadd.f32 0.0, %v248
    %v250 = vpop.f32.mrf.mxu0
    %251 = vdwg.mxu0
    %vm252 = vcmask 261120
    %v254 = vsel %vm252, %v161, 0
    %v257 = vsel %vm252, %v162, 0
    %259 = vmatprep.subr.mxu0 0.0
    %260 = vmatpush1.msra.mxu0 0.0
    %261 = vmatprep.subr.mxu0 0.0
    %262 = vmatpush1.msra.mxu0 0.0
    %263 = vmatprep.subr.mxu0 0.0
    %264 = vmatpush1.msra.mxu0 0.0
    %265 = vmatprep.subr.mxu0 0.0
    %266 = vmatpush1.msra.mxu0 0.0
    %267 = vmatprep.subr.mxu0 0.0
    %268 = vmatpush1.msra.mxu0 0.0
    %269 = vmatprep.subr.mxu0 0.0
    %270 = vmatpush1.msra.mxu0 0.0
    %271 = vmatprep.subr.mxu0 0.0
    %272 = vmatpush1.msra.mxu0 0.0
    %273 = vmatprep.subr.mxu0 0.0
    %274 = vmatpush1.msra.mxu0 0.0
    %275 = vmatprep.subr.mxu0 0.0
    %276 = vmatpush1.msra.mxu0 0.0
    %277 = vmatprep.subr.mxu0 0.0
    %278 = vmatpush1.msra.mxu0 0.0
    %279 = vmatprep.subr.mxu0 0.0
    %280 = vmatpush1.msra.mxu0 0.0
    %281 = vmatprep.subr.mxu0 0.0
    %282 = vmatpush1.msra.mxu0 0.0
    %283 = vmatprep.subr.mxu0 0.0
    %284 = vmatpush1.msra.mxu0 %v167
    %285 = vmatprep.subr.mxu0 0.0
    %286 = vmatpush1.msra.mxu0 %v166
    %287 = vmatprep.subr.mxu0 0.0
    %288 = vmatpush1.msra.mxu0 %v165
    %289 = vmatprep.subr.mxu0 0.0
    %290 = vmatpush1.msra.mxu0 %v164
    %291 = vmatprep.subr.mxu0 0.0
    %292 = vmatpush2.msra.mxu0 0.0
    %293 = vmatprep.subr.mxu0 0.0
    %294 = vmatpush2.msra.mxu0 0.0
    %295 = vmatprep.subr.mxu0 0.0
    %296 = vmatpush2.msra.mxu0 0.0
    %297 = vmatprep.subr.mxu0 0.0
    %298 = vmatpush2.msra.mxu0 0.0
    %299 = vmatprep.subr.mxu0 0.0
    %300 = vmatpush2.msra.mxu0 0.0
    %301 = vmatprep.subr.mxu0 0.0
    %302 = vmatpush2.msra.mxu0 0.0
    %303 = vmatprep.subr.mxu0 0.0
    %304 = vmatpush2.msra.mxu0 0.0
    %305 = vmatprep.subr.mxu0 0.0
    %306 = vmatpush2.msra.mxu0 0.0
    %307 = vmatprep.subr.mxu0 0.0
    %308 = vmatpush2.msra.mxu0 0.0
    %309 = vmatprep.subr.mxu0 0.0
    %310 = vmatpush2.msra.mxu0 0.0
    %311 = vmatprep.subr.mxu0 0.0
    %312 = vmatpush2.msra.mxu0 0.0
    %313 = vmatprep.subr.mxu0 0.0
    %314 = vmatpush2.msra.mxu0 0.0
    %315 = vmatprep.subr.mxu0 0.0
    %316 = vmatpush2.msra.mxu0 0.0
    %317 = vmatprep.subr.mxu0 0.0
    %318 = vmatpush2.msra.mxu0 0.0
    %319 = vmatprep.subr.mxu0 0.0
    %320 = vmatpush2.msra.mxu0 0.0
    %321 = vmatprep.subr.mxu0 0.0
    %322 = vmatpush2.msra.mxu0 0.0
    %323 = vmatprep.mubr.f32.mxu0 0.0
    %324 = vmatmul.mubr.f32.gmra.mxu0 %v254
    %v325 = vpop.f32.mrf.mxu0
    %v326 = vadd.f32 0.0, %v325
    %v327 = vpop.f32.mrf.mxu0
    %328 = vmatprep.mubr.f32.mxu0 0.0
    %329 = vmatmul.mubr.f32.gmra.mxu0 %v257
    %v330 = vpop.f32.mrf.mxu0
    %v331 = vadd.f32 0.0, %v330
    %v332 = vpop.f32.mrf.mxu0
    %333 = vdwg.mxu0
    %v334 = vadd.f32 %v244, %v326
    %v335 = vadd.f32 %v249, %v331
    %v337 = vlaneseq
    %v338 = vshrl.u32 %v337, 7
    %v339 = vsub.s32 0, %v338
    %v340 = vrot.slane %v168, %v339
    %v342 = vadd.f32 %v334, %v340
    %v343 = vadd.f32 %v335, %v340
    %v344 = vtanh.pop %v342
    %v345 = vtanh.pop %v343
    %348 = vrot.lane.b32.xlu0 %v344, 64
    %v349 = vpop.permute.xlu0 %348
    %350 = vrot.lane.b32.xlu0 %v345, 64
    %v351 = vpop.permute.xlu0 %350
    %v354 = vmul.f32 %v161, %v349
    %v355 = vmul.f32 %v162, %v351
    %v357 = vsel %vm252, %v354, 0
    %v360 = vsel %vm252, %v355, 0
    %362 = vmatprep.subr.mxu0 0.0
    %363 = vmatpush1.msra.mxu0 0.0
    %364 = vmatprep.subr.mxu0 0.0
    %365 = vmatpush1.msra.mxu0 0.0
    %366 = vmatprep.subr.mxu0 0.0
    %367 = vmatpush1.msra.mxu0 0.0
    %368 = vmatprep.subr.mxu0 0.0
    %369 = vmatpush1.msra.mxu0 0.0
    %370 = vmatprep.subr.mxu0 0.0
    %371 = vmatpush1.msra.mxu0 0.0
    %372 = vmatprep.subr.mxu0 0.0
    %373 = vmatpush1.msra.mxu0 0.0
    %374 = vmatprep.subr.mxu0 0.0
    %375 = vmatpush1.msra.mxu0 0.0
    %376 = vmatprep.subr.mxu0 0.0
    %377 = vmatpush1.msra.mxu0 0.0
    %378 = vmatprep.subr.mxu0 0.0
    %379 = vmatpush1.msra.mxu0 0.0
    %380 = vmatprep.subr.mxu0 0.0
    %381 = vmatpush1.msra.mxu0 0.0
    %382 = vmatprep.subr.mxu0 0.0
    %383 = vmatpush1.msra.mxu0 0.0
    %384 = vmatprep.subr.mxu0 0.0
    %385 = vmatpush1.msra.mxu0 0.0
    %386 = vmatprep.subr.mxu0 0.0
    %387 = vmatpush1.msra.mxu0 %v172
    %388 = vmatprep.subr.mxu0 0.0
    %389 = vmatpush1.msra.mxu0 %v171
    %390 = vmatprep.subr.mxu0 0.0
    %391 = vmatpush1.msra.mxu0 %v170
    %392 = vmatprep.subr.mxu0 0.0
    %393 = vmatpush1.msra.mxu0 %v169
    %394 = vmatprep.subr.mxu0 0.0
    %395 = vmatpush2.msra.mxu0 0.0
    %396 = vmatprep.subr.mxu0 0.0
    %397 = vmatpush2.msra.mxu0 0.0
    %398 = vmatprep.subr.mxu0 0.0
    %399 = vmatpush2.msra.mxu0 0.0
    %400 = vmatprep.subr.mxu0 0.0
    %401 = vmatpush2.msra.mxu0 0.0
    %402 = vmatprep.subr.mxu0 0.0
    %403 = vmatpush2.msra.mxu0 0.0
    %404 = vmatprep.subr.mxu0 0.0
    %405 = vmatpush2.msra.mxu0 0.0
    %406 = vmatprep.subr.mxu0 0.0
    %407 = vmatpush2.msra.mxu0 0.0
    %408 = vmatprep.subr.mxu0 0.0
    %409 = vmatpush2.msra.mxu0 0.0
    %410 = vmatprep.subr.mxu0 0.0
    %411 = vmatpush2.msra.mxu0 0.0
    %412 = vmatprep.subr.mxu0 0.0
    %413 = vmatpush2.msra.mxu0 0.0
    %414 = vmatprep.subr.mxu0 0.0
    %415 = vmatpush2.msra.mxu0 0.0
    %416 = vmatprep.subr.mxu0 0.0
    %417 = vmatpush2.msra.mxu0 0.0
    %418 = vmatprep.subr.mxu0 0.0
    %419 = vmatpush2.msra.mxu0 0.0
    %420 = vmatprep.subr.mxu0 0.0
    %421 = vmatpush2.msra.mxu0 0.0
    %422 = vmatprep.subr.mxu0 0.0
    %423 = vmatpush2.msra.mxu0 0.0
    %424 = vmatprep.subr.mxu0 0.0
    %425 = vmatpush2.msra.mxu0 0.0
    %426 = vmatprep.mubr.f32.mxu0 0.0
    %427 = vmatmul.mubr.f32.gmra.mxu0 %v357
    %v428 = vpop.f32.mrf.mxu0
    %v429 = vadd.f32 0.0, %v428
    %v430 = vpop.f32.mrf.mxu0
    %431 = vmatprep.mubr.f32.mxu0 0.0
    %432 = vmatmul.mubr.f32.gmra.mxu0 %v360
    %v433 = vpop.f32.mrf.mxu0
    %v434 = vadd.f32 0.0, %v433
    %v435 = vpop.f32.mrf.mxu0
    %436 = vdwg.mxu0
    %439 = vrot.lane.b32.xlu0 %v429, 96
    %v440 = vpop.permute.xlu0 %439
    %441 = vrot.lane.b32.xlu0 %v434, 96
    %v442 = vpop.permute.xlu0 %441
    %v445 = vadd.f32 %v244, %v440
    %v446 = vadd.f32 %v249, %v442
    %v448 = vlaneseq
    %v449 = vshrl.u32 %v448, 7
    %v450 = vsub.s32 0, %v449
    %v451 = vrot.slane %v173, %v450
    %452 = vrot.lane.b32.xlu0 %v451, 96
    %v453 = vpop.permute.xlu0 %452
    %v455 = vadd.f32 %v445, %v453
    %v456 = vadd.f32 %v446, %v453
    %v457 = vtanh.pop %v455
    %v458 = vtanh.pop %v456
    %v459 = vsub.f32 1.0, %v344
    %v460 = vsub.f32 1.0, %v345
    %463 = vrot.lane.b32.xlu0 %v457, 64
    %v464 = vpop.permute.xlu0 %463
    %465 = vrot.lane.b32.xlu0 %v458, 64
    %v466 = vpop.permute.xlu0 %465
    %v469 = vmul.f32 %v459, %v464
    %v470 = vmul.f32 %v460, %v466
    %v471 = vmul.f32 %v344, %v161
    %v472 = vmul.f32 %v345, %v162
    %475 = vrot.lane.b32.xlu0 %v471, 32
    %v476 = vpop.permute.xlu0 %475
    %477 = vrot.lane.b32.xlu0 %v472, 32
    %v478 = vpop.permute.xlu0 %477
    %v481 = vadd.f32 %v469, %v476
    %v482 = vadd.f32 %v470, %v478
    %s483 = scalar_lea.vmem %s3, 4
    %v484 = vld [vmem:[%s483] sm:$0xf]
    %s485 = scalar_lea.vmem [#allocation3], 32
    %v486 = vld [vmem:[%s485] sm:$0xff]
    %v487 = vld [vmem:[%s485 + $0x8] sm:$0xff]
    %v488 = vld [vmem:[%s485 + $0x10] sm:$0xff]
    %v489 = vld [vmem:[%s485 + $0x18] sm:$0xff]
    %s490 = scalar_lea.vmem %s5, 1
    %v491 = vld [vmem:[%s490] sm:$0x1]
    %s492 = scalar_lea.vmem [#allocation5], 32
    %v493 = vld [vmem:[%s492] sm:$0xff]
    %v494 = vld [vmem:[%s492 + $0x8] sm:$0xff]
    %v495 = vld [vmem:[%s492 + $0x10] sm:$0xff]
    %v496 = vld [vmem:[%s492 + $0x18] sm:$0xff]
    %s497 = scalar_lea.vmem %s7, 1
    %v498 = vld [vmem:[%s497] sm:$0x1]
    %v500 = vsel %vm82, %v484, 0
    %502 = vmatprep.subr.mxu0 0.0
    %503 = vmatpush1.msra.mxu0 0.0
    %504 = vmatprep.subr.mxu0 0.0
    %505 = vmatpush1.msra.mxu0 0.0
    %506 = vmatprep.subr.mxu0 0.0
    %507 = vmatpush1.msra.mxu0 0.0
    %508 = vmatprep.subr.mxu0 0.0
    %509 = vmatpush1.msra.mxu0 0.0
    %510 = vmatprep.subr.mxu0 0.0
    %511 = vmatpush1.msra.mxu0 0.0
    %512 = vmatprep.subr.mxu0 0.0
    %513 = vmatpush1.msra.mxu0 0.0
    %514 = vmatprep.subr.mxu0 0.0
    %515 = vmatpush1.msra.mxu0 0.0
    %516 = vmatprep.subr.mxu0 0.0
    %517 = vmatpush1.msra.mxu0 0.0
    %518 = vmatprep.subr.mxu0 0.0
    %519 = vmatpush1.msra.mxu0 0.0
    %520 = vmatprep.subr.mxu0 0.0
    %521 = vmatpush1.msra.mxu0 0.0
    %522 = vmatprep.subr.mxu0 0.0
    %523 = vmatpush1.msra.mxu0 0.0
    %524 = vmatprep.subr.mxu0 0.0
    %525 = vmatpush1.msra.mxu0 0.0
    %526 = vmatprep.subr.mxu0 0.0
    %527 = vmatpush1.msra.mxu0 0.0
    %528 = vmatprep.subr.mxu0 0.0
    %529 = vmatpush1.msra.mxu0 0.0
    %530 = vmatprep.subr.mxu0 0.0
    %531 = vmatpush1.msra.mxu0 0.0
    %532 = vmatprep.subr.mxu0 0.0
    %533 = vmatpush1.msra.mxu0 %v500
    %534 = vmatprep.subr.mxu0 0.0
    %535 = vmatpush2.msra.mxu0 0.0
    %536 = vmatprep.subr.mxu0 0.0
    %537 = vmatpush2.msra.mxu0 0.0
    %538 = vmatprep.subr.mxu0 0.0
    %539 = vmatpush2.msra.mxu0 0.0
    %540 = vmatprep.subr.mxu0 0.0
    %541 = vmatpush2.msra.mxu0 0.0
    %542 = vmatprep.subr.mxu0 0.0
    %543 = vmatpush2.msra.mxu0 0.0
    %544 = vmatprep.subr.mxu0 0.0
    %545 = vmatpush2.msra.mxu0 0.0
    %546 = vmatprep.subr.mxu0 0.0
    %547 = vmatpush2.msra.mxu0 0.0
    %548 = vmatprep.subr.mxu0 0.0
    %549 = vmatpush2.msra.mxu0 0.0
    %550 = vmatprep.subr.mxu0 0.0
    %551 = vmatpush2.msra.mxu0 0.0
    %552 = vmatprep.subr.mxu0 0.0
    %553 = vmatpush2.msra.mxu0 0.0
    %554 = vmatprep.subr.mxu0 0.0
    %555 = vmatpush2.msra.mxu0 0.0
    %556 = vmatprep.subr.mxu0 0.0
    %557 = vmatpush2.msra.mxu0 0.0
    %558 = vmatprep.subr.mxu0 0.0
    %559 = vmatpush2.msra.mxu0 0.0
    %560 = vmatprep.subr.mxu0 0.0
    %561 = vmatpush2.msra.mxu0 0.0
    %562 = vmatprep.subr.mxu0 0.0
    %563 = vmatpush2.msra.mxu0 0.0
    %564 = vmatprep.subr.mxu0 0.0
    %565 = vmatpush2.msra.mxu0 0.0
    %566 = vmatprep.mubr.f32.mxu0 0.0
    %567 = vmatmul.mubr.f32.gmra.mxu0 %v77
    %v568 = vpop.f32.mrf.mxu0
    %v569 = vadd.f32 0.0, %v568
    %v570 = vpop.f32.mrf.mxu0
    %571 = vmatprep.mubr.f32.mxu0 0.0
    %572 = vmatmul.mubr.f32.gmra.mxu0 %v80
    %v573 = vpop.f32.mrf.mxu0
    %v574 = vadd.f32 0.0, %v573
    %v575 = vpop.f32.mrf.mxu0
    %576 = vdwg.mxu0
    %579 = vrot.lane.b32.xlu0 %v481, 96
    %v580 = vpop.permute.xlu0 %579
    %581 = vrot.lane.b32.xlu0 %v482, 96
    %v582 = vpop.permute.xlu0 %581
    %v583 = vsel %vm252, %v580, 0
    %v585 = vsel %vm252, %v582, 0
    %587 = vmatprep.subr.mxu0 0.0
    %588 = vmatpush1.msra.mxu0 0.0
    %589 = vmatprep.subr.mxu0 0.0
    %590 = vmatpush1.msra.mxu0 0.0
    %591 = vmatprep.subr.mxu0 0.0
    %592 = vmatpush1.msra.mxu0 0.0
    %593 = vmatprep.subr.mxu0 0.0
    %594 = vmatpush1.msra.mxu0 0.0
    %595 = vmatprep.subr.mxu0 0.0
    %596 = vmatpush1.msra.mxu0 0.0
    %597 = vmatprep.subr.mxu0 0.0
    %598 = vmatpush1.msra.mxu0 0.0
    %599 = vmatprep.subr.mxu0 0.0
    %600 = vmatpush1.msra.mxu0 0.0
    %601 = vmatprep.subr.mxu0 0.0
    %602 = vmatpush1.msra.mxu0 0.0
    %603 = vmatprep.subr.mxu0 0.0
    %604 = vmatpush1.msra.mxu0 0.0
    %605 = vmatprep.subr.mxu0 0.0
    %606 = vmatpush1.msra.mxu0 0.0
    %607 = vmatprep.subr.mxu0 0.0
    %608 = vmatpush1.msra.mxu0 0.0
    %609 = vmatprep.subr.mxu0 0.0
    %610 = vmatpush1.msra.mxu0 0.0
    %611 = vmatprep.subr.mxu0 0.0
    %612 = vmatpush1.msra.mxu0 %v489
    %613 = vmatprep.subr.mxu0 0.0
    %614 = vmatpush1.msra.mxu0 %v488
    %615 = vmatprep.subr.mxu0 0.0
    %616 = vmatpush1.msra.mxu0 %v487
    %617 = vmatprep.subr.mxu0 0.0
    %618 = vmatpush1.msra.mxu0 %v486
    %619 = vmatprep.subr.mxu0 0.0
    %620 = vmatpush2.msra.mxu0 0.0
    %621 = vmatprep.subr.mxu0 0.0
    %622 = vmatpush2.msra.mxu0 0.0
    %623 = vmatprep.subr.mxu0 0.0
    %624 = vmatpush2.msra.mxu0 0.0
    %625 = vmatprep.subr.mxu0 0.0
    %626 = vmatpush2.msra.mxu0 0.0
    %627 = vmatprep.subr.mxu0 0.0
    %628 = vmatpush2.msra.mxu0 0.0
    %629 = vmatprep.subr.mxu0 0.0
    %630 = vmatpush2.msra.mxu0 0.0
    %631 = vmatprep.subr.mxu0 0.0
    %632 = vmatpush2.msra.mxu0 0.0
    %633 = vmatprep.subr.mxu0 0.0
    %634 = vmatpush2.msra.mxu0 0.0
    %635 = vmatprep.subr.mxu0 0.0
    %636 = vmatpush2.msra.mxu0 0.0
    %637 = vmatprep.subr.mxu0 0.0
    %638 = vmatpush2.msra.mxu0 0.0
    %639 = vmatprep.subr.mxu0 0.0
    %640 = vmatpush2.msra.mxu0 0.0
    %641 = vmatprep.subr.mxu0 0.0
    %642 = vmatpush2.msra.mxu0 0.0
    %643 = vmatprep.subr.mxu0 0.0
    %644 = vmatpush2.msra.mxu0 0.0
    %645 = vmatprep.subr.mxu0 0.0
    %646 = vmatpush2.msra.mxu0 0.0
    %647 = vmatprep.subr.mxu0 0.0
    %648 = vmatpush2.msra.mxu0 0.0
    %649 = vmatprep.subr.mxu0 0.0
    %650 = vmatpush2.msra.mxu0 0.0
    %651 = vmatprep.mubr.f32.mxu0 0.0
    %652 = vmatmul.mubr.f32.gmra.mxu0 %v583
    %v653 = vpop.f32.mrf.mxu0
    %v654 = vadd.f32 0.0, %v653
    %v655 = vpop.f32.mrf.mxu0
    %656 = vmatprep.mubr.f32.mxu0 0.0
    %657 = vmatmul.mubr.f32.gmra.mxu0 %v585
    %v658 = vpop.f32.mrf.mxu0
    %v659 = vadd.f32 0.0, %v658
    %v660 = vpop.f32.mrf.mxu0
    %661 = vdwg.mxu0
    %v662 = vadd.f32 %v569, %v654
    %v663 = vadd.f32 %v574, %v659
    %v665 = vlaneseq
    %v666 = vshrl.u32 %v665, 7
    %v667 = vsub.s32 0, %v666
    %v668 = vrot.slane %v491, %v667
    %v670 = vadd.f32 %v662, %v668
    %v671 = vadd.f32 %v663, %v668
    %v672 = vtanh.pop %v670
    %v673 = vtanh.pop %v671
    %676 = vrot.lane.b32.xlu0 %v672, 96
    %v677 = vpop.permute.xlu0 %676
    %678 = vrot.lane.b32.xlu0 %v673, 96
    %v679 = vpop.permute.xlu0 %678
    %v682 = vmul.f32 %v481, %v677
    %v683 = vmul.f32 %v482, %v679
    %686 = vrot.lane.b32.xlu0 %v682, 96
    %v687 = vpop.permute.xlu0 %686
    %688 = vrot.lane.b32.xlu0 %v683, 96
    %v689 = vpop.permute.xlu0 %688
    %v690 = vsel %vm252, %v687, 0
    %v692 = vsel %vm252, %v689, 0
    %694 = vmatprep.subr.mxu0 0.0
    %695 = vmatpush1.msra.mxu0 0.0
    %696 = vmatprep.subr.mxu0 0.0
    %697 = vmatpush1.msra.mxu0 0.0
    %698 = vmatprep.subr.mxu0 0.0
    %699 = vmatpush1.msra.mxu0 0.0
    %700 = vmatprep.subr.mxu0 0.0
    %701 = vmatpush1.msra.mxu0 0.0
    %702 = vmatprep.subr.mxu0 0.0
    %703 = vmatpush1.msra.mxu0 0.0
    %704 = vmatprep.subr.mxu0 0.0
    %705 = vmatpush1.msra.mxu0 0.0
    %706 = vmatprep.subr.mxu0 0.0
    %707 = vmatpush1.msra.mxu0 0.0
    %708 = vmatprep.subr.mxu0 0.0
    %709 = vmatpush1.msra.mxu0 0.0
    %710 = vmatprep.subr.mxu0 0.0
    %711 = vmatpush1.msra.mxu0 0.0
    %712 = vmatprep.subr.mxu0 0.0
    %713 = vmatpush1.msra.mxu0 0.0
    %714 = vmatprep.subr.mxu0 0.0
    %715 = vmatpush1.msra.mxu0 0.0
    %716 = vmatprep.subr.mxu0 0.0
    %717 = vmatpush1.msra.mxu0 0.0
    %718 = vmatprep.subr.mxu0 0.0
    %719 = vmatpush1.msra.mxu0 %v496
    %720 = vmatprep.subr.mxu0 0.0
    %721 = vmatpush1.msra.mxu0 %v495
    %722 = vmatprep.subr.mxu0 0.0
    %723 = vmatpush1.msra.mxu0 %v494
    %724 = vmatprep.subr.mxu0 0.0
    %725 = vmatpush1.msra.mxu0 %v493
    %726 = vmatprep.subr.mxu0 0.0
    %727 = vmatpush2.msra.mxu0 0.0
    %728 = vmatprep.subr.mxu0 0.0
    %729 = vmatpush2.msra.mxu0 0.0
    %730 = vmatprep.subr.mxu0 0.0
    %731 = vmatpush2.msra.mxu0 0.0
    %732 = vmatprep.subr.mxu0 0.0
    %733 = vmatpush2.msra.mxu0 0.0
    %734 = vmatprep.subr.mxu0 0.0
    %735 = vmatpush2.msra.mxu0 0.0
    %736 = vmatprep.subr.mxu0 0.0
    %737 = vmatpush2.msra.mxu0 0.0
    %738 = vmatprep.subr.mxu0 0.0
    %739 = vmatpush2.msra.mxu0 0.0
    %740 = vmatprep.subr.mxu0 0.0
    %741 = vmatpush2.msra.mxu0 0.0
    %742 = vmatprep.subr.mxu0 0.0
    %743 = vmatpush2.msra.mxu0 0.0
    %744 = vmatprep.subr.mxu0 0.0
    %745 = vmatpush2.msra.mxu0 0.0
    %746 = vmatprep.subr.mxu0 0.0
    %747 = vmatpush2.msra.mxu0 0.0
    %748 = vmatprep.subr.mxu0 0.0
    %749 = vmatpush2.msra.mxu0 0.0
    %750 = vmatprep.subr.mxu0 0.0
    %751 = vmatpush2.msra.mxu0 0.0
    %752 = vmatprep.subr.mxu0 0.0
    %753 = vmatpush2.msra.mxu0 0.0
    %754 = vmatprep.subr.mxu0 0.0
    %755 = vmatpush2.msra.mxu0 0.0
    %756 = vmatprep.subr.mxu0 0.0
    %757 = vmatpush2.msra.mxu0 0.0
    %758 = vmatprep.mubr.f32.mxu0 0.0
    %759 = vmatmul.mubr.f32.gmra.mxu0 %v690
    %v760 = vpop.f32.mrf.mxu0
    %v761 = vadd.f32 0.0, %v760
    %v762 = vpop.f32.mrf.mxu0
    %763 = vmatprep.mubr.f32.mxu0 0.0
    %764 = vmatmul.mubr.f32.gmra.mxu0 %v692
    %v765 = vpop.f32.mrf.mxu0
    %v766 = vadd.f32 0.0, %v765
    %v767 = vpop.f32.mrf.mxu0
    %768 = vdwg.mxu0
    %771 = vrot.lane.b32.xlu0 %v761, 96
    %v772 = vpop.permute.xlu0 %771
    %773 = vrot.lane.b32.xlu0 %v766, 96
    %v774 = vpop.permute.xlu0 %773
    %v777 = vadd.f32 %v569, %v772
    %v778 = vadd.f32 %v574, %v774
    %v780 = vlaneseq
    %v781 = vshrl.u32 %v780, 7
    %v782 = vsub.s32 0, %v781
    %v783 = vrot.slane %v498, %v782
    %784 = vrot.lane.b32.xlu0 %v783, 96
    %v785 = vpop.permute.xlu0 %784
    %v787 = vadd.f32 %v777, %v785
    %v788 = vadd.f32 %v778, %v785
    %v789 = vtanh.pop %v787
    %v790 = vtanh.pop %v788
    %v791 = vsub.f32 1.0, %v672
    %v792 = vsub.f32 1.0, %v673
    %795 = vrot.lane.b32.xlu0 %v789, 64
    %v796 = vpop.permute.xlu0 %795
    %797 = vrot.lane.b32.xlu0 %v790, 64
    %v798 = vpop.permute.xlu0 %797
    %v801 = vmul.f32 %v791, %v796
    %v802 = vmul.f32 %v792, %v798
    %v805 = vmul.f32 %v672, %v580
    %v806 = vmul.f32 %v673, %v582
    %809 = vrot.lane.b32.xlu0 %v805, 32
    %v810 = vpop.permute.xlu0 %809
    %811 = vrot.lane.b32.xlu0 %v806, 32
    %v812 = vpop.permute.xlu0 %811
    %v815 = vadd.f32 %v801, %v810
    %v816 = vadd.f32 %v802, %v812
    %s817 = scalar_lea.vmem %s3, 8
    %v818 = vld [vmem:[%s817] sm:$0xf]
    %s819 = scalar_lea.vmem [#allocation3], 64
    %v820 = vld [vmem:[%s819] sm:$0xff]
    %v821 = vld [vmem:[%s819 + $0x8] sm:$0xff]
    %v822 = vld [vmem:[%s819 + $0x10] sm:$0xff]
    %v823 = vld [vmem:[%s819 + $0x18] sm:$0xff]
    %s824 = scalar_lea.vmem %s5, 2
    %v825 = vld [vmem:[%s824] sm:$0x1]
    %s826 = scalar_lea.vmem [#allocation5], 64
    %v827 = vld [vmem:[%s826] sm:$0xff]
    %v828 = vld [vmem:[%s826 + $0x8] sm:$0xff]
    %v829 = vld [vmem:[%s826 + $0x10] sm:$0xff]
    %v830 = vld [vmem:[%s826 + $0x18] sm:$0xff]
    %s831 = scalar_lea.vmem %s7, 2
    %v832 = vld [vmem:[%s831] sm:$0x1]
    %v834 = vsel %vm82, %v818, 0
    %836 = vmatprep.subr.mxu0 0.0
    %837 = vmatpush1.msra.mxu0 0.0
    %838 = vmatprep.subr.mxu0 0.0
    %839 = vmatpush1.msra.mxu0 0.0
    %840 = vmatprep.subr.mxu0 0.0
    %841 = vmatpush1.msra.mxu0 0.0
    %842 = vmatprep.subr.mxu0 0.0
    %843 = vmatpush1.msra.mxu0 0.0
    %844 = vmatprep.subr.mxu0 0.0
    %845 = vmatpush1.msra.mxu0 0.0
    %846 = vmatprep.subr.mxu0 0.0
    %847 = vmatpush1.msra.mxu0 0.0
    %848 = vmatprep.subr.mxu0 0.0
    %849 = vmatpush1.msra.mxu0 0.0
    %850 = vmatprep.subr.mxu0 0.0
    %851 = vmatpush1.msra.mxu0 0.0
    %852 = vmatprep.subr.mxu0 0.0
    %853 = vmatpush1.msra.mxu0 0.0
    %854 = vmatprep.subr.mxu0 0.0
    %855 = vmatpush1.msra.mxu0 0.0
    %856 = vmatprep.subr.mxu0 0.0
    %857 = vmatpush1.msra.mxu0 0.0
    %858 = vmatprep.subr.mxu0 0.0
    %859 = vmatpush1.msra.mxu0 0.0
    %860 = vmatprep.subr.mxu0 0.0
    %861 = vmatpush1.msra.mxu0 0.0
    %862 = vmatprep.subr.mxu0 0.0
    %863 = vmatpush1.msra.mxu0 0.0
    %864 = vmatprep.subr.mxu0 0.0
    %865 = vmatpush1.msra.mxu0 0.0
    %866 = vmatprep.subr.mxu0 0.0
    %867 = vmatpush1.msra.mxu0 %v834
    %868 = vmatprep.subr.mxu0 0.0
    %869 = vmatpush2.msra.mxu0 0.0
    %870 = vmatprep.subr.mxu0 0.0
    %871 = vmatpush2.msra.mxu0 0.0
    %872 = vmatprep.subr.mxu0 0.0
    %873 = vmatpush2.msra.mxu0 0.0
    %874 = vmatprep.subr.mxu0 0.0
    %875 = vmatpush2.msra.mxu0 0.0
    %876 = vmatprep.subr.mxu0 0.0
    %877 = vmatpush2.msra.mxu0 0.0
    %878 = vmatprep.subr.mxu0 0.0
    %879 = vmatpush2.msra.mxu0 0.0
    %880 = vmatprep.subr.mxu0 0.0
    %881 = vmatpush2.msra.mxu0 0.0
    %882 = vmatprep.subr.mxu0 0.0
    %883 = vmatpush2.msra.mxu0 0.0
    %884 = vmatprep.subr.mxu0 0.0
    %885 = vmatpush2.msra.mxu0 0.0
    %886 = vmatprep.subr.mxu0 0.0
    %887 = vmatpush2.msra.mxu0 0.0
    %888 = vmatprep.subr.mxu0 0.0
    %889 = vmatpush2.msra.mxu0 0.0
    %890 = vmatprep.subr.mxu0 0.0
    %891 = vmatpush2.msra.mxu0 0.0
    %892 = vmatprep.subr.mxu0 0.0
    %893 = vmatpush2.msra.mxu0 0.0
    %894 = vmatprep.subr.mxu0 0.0
    %895 = vmatpush2.msra.mxu0 0.0
    %896 = vmatprep.subr.mxu0 0.0
    %897 = vmatpush2.msra.mxu0 0.0
    %898 = vmatprep.subr.mxu0 0.0
    %899 = vmatpush2.msra.mxu0 0.0
    %900 = vmatprep.mubr.f32.mxu0 0.0
    %901 = vmatmul.mubr.f32.gmra.mxu0 %v77
    %v902 = vpop.f32.mrf.mxu0
    %v903 = vadd.f32 0.0, %v902
    %v904 = vpop.f32.mrf.mxu0
    %905 = vmatprep.mubr.f32.mxu0 0.0
    %906 = vmatmul.mubr.f32.gmra.mxu0 %v80
    %v907 = vpop.f32.mrf.mxu0
    %v908 = vadd.f32 0.0, %v907
    %v909 = vpop.f32.mrf.mxu0
    %910 = vdwg.mxu0
    %913 = vrot.lane.b32.xlu0 %v815, 96
    %v914 = vpop.permute.xlu0 %913
    %915 = vrot.lane.b32.xlu0 %v816, 96
    %v916 = vpop.permute.xlu0 %915
    %v917 = vsel %vm252, %v914, 0
    %v919 = vsel %vm252, %v916, 0
    %921 = vmatprep.subr.mxu0 0.0
    %922 = vmatpush1.msra.mxu0 0.0
    %923 = vmatprep.subr.mxu0 0.0
    %924 = vmatpush1.msra.mxu0 0.0
    %925 = vmatprep.subr.mxu0 0.0
    %926 = vmatpush1.msra.mxu0 0.0
    %927 = vmatprep.subr.mxu0 0.0
    %928 = vmatpush1.msra.mxu0 0.0
    %929 = vmatprep.subr.mxu0 0.0
    %930 = vmatpush1.msra.mxu0 0.0
    %931 = vmatprep.subr.mxu0 0.0
    %932 = vmatpush1.msra.mxu0 0.0
    %933 = vmatprep.subr.mxu0 0.0
    %934 = vmatpush1.msra.mxu0 0.0
    %935 = vmatprep.subr.mxu0 0.0
    %936 = vmatpush1.msra.mxu0 0.0
    %937 = vmatprep.subr.mxu0 0.0
    %938 = vmatpush1.msra.mxu0 0.0
    %939 = vmatprep.subr.mxu0 0.0
    %940 = vmatpush1.msra.mxu0 0.0
    %941 = vmatprep.subr.mxu0 0.0
    %942 = vmatpush1.msra.mxu0 0.0
    %943 = vmatprep.subr.mxu0 0.0
    %944 = vmatpush1.msra.mxu0 0.0
    %945 = vmatprep.subr.mxu0 0.0
    %946 = vmatpush1.msra.mxu0 %v823
    %947 = vmatprep.subr.mxu0 0.0
    %948 = vmatpush1.msra.mxu0 %v822
    %949 = vmatprep.subr.mxu0 0.0
    %950 = vmatpush1.msra.mxu0 %v821
    %951 = vmatprep.subr.mxu0 0.0
    %952 = vmatpush1.msra.mxu0 %v820
    %953 = vmatprep.subr.mxu0 0.0
    %954 = vmatpush2.msra.mxu0 0.0
    %955 = vmatprep.subr.mxu0 0.0
    %956 = vmatpush2.msra.mxu0 0.0
    %957 = vmatprep.subr.mxu0 0.0
    %958 = vmatpush2.msra.mxu0 0.0
    %959 = vmatprep.subr.mxu0 0.0
    %960 = vmatpush2.msra.mxu0 0.0
    %961 = vmatprep.subr.mxu0 0.0
    %962 = vmatpush2.msra.mxu0 0.0
    %963 = vmatprep.subr.mxu0 0.0
    %964 = vmatpush2.msra.mxu0 0.0
    %965 = vmatprep.subr.mxu0 0.0
    %966 = vmatpush2.msra.mxu0 0.0
    %967 = vmatprep.subr.mxu0 0.0
    %968 = vmatpush2.msra.mxu0 0.0
    %969 = vmatprep.subr.mxu0 0.0
    %970 = vmatpush2.msra.mxu0 0.0
    %971 = vmatprep.subr.mxu0 0.0
    %972 = vmatpush2.msra.mxu0 0.0
    %973 = vmatprep.subr.mxu0 0.0
    %974 = vmatpush2.msra.mxu0 0.0
    %975 = vmatprep.subr.mxu0 0.0
    %976 = vmatpush2.msra.mxu0 0.0
    %977 = vmatprep.subr.mxu0 0.0
    %978 = vmatpush2.msra.mxu0 0.0
    %979 = vmatprep.subr.mxu0 0.0
    %980 = vmatpush2.msra.mxu0 0.0
    %981 = vmatprep.subr.mxu0 0.0
    %982 = vmatpush2.msra.mxu0 0.0
    %983 = vmatprep.subr.mxu0 0.0
    %984 = vmatpush2.msra.mxu0 0.0
    %985 = vmatprep.mubr.f32.mxu0 0.0
    %986 = vmatmul.mubr.f32.gmra.mxu0 %v917
    %v987 = vpop.f32.mrf.mxu0
    %v988 = vadd.f32 0.0, %v987
    %v989 = vpop.f32.mrf.mxu0
    %990 = vmatprep.mubr.f32.mxu0 0.0
    %991 = vmatmul.mubr.f32.gmra.mxu0 %v919
    %v992 = vpop.f32.mrf.mxu0
    %v993 = vadd.f32 0.0, %v992
    %v994 = vpop.f32.mrf.mxu0
    %995 = vdwg.mxu0
    %v996 = vadd.f32 %v903, %v988
    %v997 = vadd.f32 %v908, %v993
    %v999 = vlaneseq
    %v1000 = vshrl.u32 %v999, 7
    %v1001 = vsub.s32 0, %v1000
    %v1002 = vrot.slane %v825, %v1001
    %v1004 = vadd.f32 %v996, %v1002
    %v1005 = vadd.f32 %v997, %v1002
    %v1006 = vtanh.pop %v1004
    %v1007 = vtanh.pop %v1005
    %1010 = vrot.lane.b32.xlu0 %v1006, 96
    %v1011 = vpop.permute.xlu0 %1010
    %1012 = vrot.lane.b32.xlu0 %v1007, 96
    %v1013 = vpop.permute.xlu0 %1012
    %v1016 = vmul.f32 %v815, %v1011
    %v1017 = vmul.f32 %v816, %v1013
    %1020 = vrot.lane.b32.xlu0 %v1016, 96
    %v1021 = vpop.permute.xlu0 %1020
    %1022 = vrot.lane.b32.xlu0 %v1017, 96
    %v1023 = vpop.permute.xlu0 %1022
    %v1024 = vsel %vm252, %v1021, 0
    %v1026 = vsel %vm252, %v1023, 0
    %1028 = vmatprep.subr.mxu0 0.0
    %1029 = vmatpush1.msra.mxu0 0.0
    %1030 = vmatprep.subr.mxu0 0.0
    %1031 = vmatpush1.msra.mxu0 0.0
    %1032 = vmatprep.subr.mxu0 0.0
    %1033 = vmatpush1.msra.mxu0 0.0
    %1034 = vmatprep.subr.mxu0 0.0
    %1035 = vmatpush1.msra.mxu0 0.0
    %1036 = vmatprep.subr.mxu0 0.0
    %1037 = vmatpush1.msra.mxu0 0.0
    %1038 = vmatprep.subr.mxu0 0.0
    %1039 = vmatpush1.msra.mxu0 0.0
    %1040 = vmatprep.subr.mxu0 0.0
    %1041 = vmatpush1.msra.mxu0 0.0
    %1042 = vmatprep.subr.mxu0 0.0
    %1043 = vmatpush1.msra.mxu0 0.0
    %1044 = vmatprep.subr.mxu0 0.0
    %1045 = vmatpush1.msra.mxu0 0.0
    %1046 = vmatprep.subr.mxu0 0.0
    %1047 = vmatpush1.msra.mxu0 0.0
    %1048 = vmatprep.subr.mxu0 0.0
    %1049 = vmatpush1.msra.mxu0 0.0
    %1050 = vmatprep.subr.mxu0 0.0
    %1051 = vmatpush1.msra.mxu0 0.0
    %1052 = vmatprep.subr.mxu0 0.0
    %1053 = vmatpush1.msra.mxu0 %v830
    %1054 = vmatprep.subr.mxu0 0.0
    %1055 = vmatpush1.msra.mxu0 %v829
    %1056 = vmatprep.subr.mxu0 0.0
    %1057 = vmatpush1.msra.mxu0 %v828
    %1058 = vmatprep.subr.mxu0 0.0
    %1059 = vmatpush1.msra.mxu0 %v827
    %1060 = vmatprep.subr.mxu0 0.0
    %1061 = vmatpush2.msra.mxu0 0.0
    %1062 = vmatprep.subr.mxu0 0.0
    %1063 = vmatpush2.msra.mxu0 0.0
    %1064 = vmatprep.subr.mxu0 0.0
    %1065 = vmatpush2.msra.mxu0 0.0
    %1066 = vmatprep.subr.mxu0 0.0
    %1067 = vmatpush2.msra.mxu0 0.0
    %1068 = vmatprep.subr.mxu0 0.0
    %1069 = vmatpush2.msra.mxu0 0.0
    %1070 = vmatprep.subr.mxu0 0.0
    %1071 = vmatpush2.msra.mxu0 0.0
    %1072 = vmatprep.subr.mxu0 0.0
    %1073 = vmatpush2.msra.mxu0 0.0
    %1074 = vmatprep.subr.mxu0 0.0
    %1075 = vmatpush2.msra.mxu0 0.0
    %1076 = vmatprep.subr.mxu0 0.0
    %1077 = vmatpush2.msra.mxu0 0.0
    %1078 = vmatprep.subr.mxu0 0.0
    %1079 = vmatpush2.msra.mxu0 0.0
    %1080 = vmatprep.subr.mxu0 0.0
    %1081 = vmatpush2.msra.mxu0 0.0
    %1082 = vmatprep.subr.mxu0 0.0
    %1083 = vmatpush2.msra.mxu0 0.0
    %1084 = vmatprep.subr.mxu0 0.0
    %1085 = vmatpush2.msra.mxu0 0.0
    %1086 = vmatprep.subr.mxu0 0.0
    %1087 = vmatpush2.msra.mxu0 0.0
    %1088 = vmatprep.subr.mxu0 0.0
    %1089 = vmatpush2.msra.mxu0 0.0
    %1090 = vmatprep.subr.mxu0 0.0
    %1091 = vmatpush2.msra.mxu0 0.0
    %1092 = vmatprep.mubr.f32.mxu0 0.0
    %1093 = vmatmul.mubr.f32.gmra.mxu0 %v1024
    %v1094 = vpop.f32.mrf.mxu0
    %v1095 = vadd.f32 0.0, %v1094
    %v1096 = vpop.f32.mrf.mxu0
    %1097 = vmatprep.mubr.f32.mxu0 0.0
    %1098 = vmatmul.mubr.f32.gmra.mxu0 %v1026
    %v1099 = vpop.f32.mrf.mxu0
    %v1100 = vadd.f32 0.0, %v1099
    %v1101 = vpop.f32.mrf.mxu0
    %1102 = vdwg.mxu0
    %1105 = vrot.lane.b32.xlu0 %v1095, 96
    %v1106 = vpop.permute.xlu0 %1105
    %1107 = vrot.lane.b32.xlu0 %v1100, 96
    %v1108 = vpop.permute.xlu0 %1107
    %v1111 = vadd.f32 %v903, %v1106
    %v1112 = vadd.f32 %v908, %v1108
    %v1114 = vlaneseq
    %v1115 = vshrl.u32 %v1114, 7
    %v1116 = vsub.s32 0, %v1115
    %v1117 = vrot.slane %v832, %v1116
    %1118 = vrot.lane.b32.xlu0 %v1117, 96
    %v1119 = vpop.permute.xlu0 %1118
    %v1121 = vadd.f32 %v1111, %v1119
    %v1122 = vadd.f32 %v1112, %v1119
    %v1123 = vtanh.pop %v1121
    %v1124 = vtanh.pop %v1122
    %v1125 = vsub.f32 1.0, %v1006
    %v1126 = vsub.f32 1.0, %v1007
    %1129 = vrot.lane.b32.xlu0 %v1123, 64
    %v1130 = vpop.permute.xlu0 %1129
    %1131 = vrot.lane.b32.xlu0 %v1124, 64
    %v1132 = vpop.permute.xlu0 %1131
    %v1135 = vmul.f32 %v1125, %v1130
    %v1136 = vmul.f32 %v1126, %v1132
    %v1139 = vmul.f32 %v1006, %v914
    %v1140 = vmul.f32 %v1007, %v916
    %1143 = vrot.lane.b32.xlu0 %v1139, 32
    %v1144 = vpop.permute.xlu0 %1143
    %1145 = vrot.lane.b32.xlu0 %v1140, 32
    %v1146 = vpop.permute.xlu0 %1145
    %v1149 = vadd.f32 %v1135, %v1144
    %v1150 = vadd.f32 %v1136, %v1146
    %v1151 = vld [vmem:[%s8] sm:$0xff]
    %v1152 = vld [vmem:[%s8 + $0x8] sm:$0xff]
    %v1153 = vld [vmem:[%s8 + $0x10] sm:$0xff]
    %v1154 = vld [vmem:[%s8 + $0x18] sm:$0xff]
    %v1155 = vld [vmem:[#allocation2] sm:$0x1]
    %v1157 = vlaneseq
    %v1158 = vshrl.u32 %v1157, 7
    %v1159 = vsub.s32 0, %v1158
    %v1160 = vrot.slane %v1155, %v1159
    %1164 = vrot.lane.b32.xlu0 %v1149, 96
    %v1165 = vpop.permute.xlu0 %1164
    %1166 = vrot.lane.b32.xlu0 %v1150, 96
    %v1167 = vpop.permute.xlu0 %1166
    %v1168 = vsel %vm252, %v1165, 0
    %v1170 = vsel %vm252, %v1167, 0
    %1172 = vmatprep.subr.mxu0 0.0
    %1173 = vmatpush1.msra.mxu0 0.0
    %1174 = vmatprep.subr.mxu0 0.0
    %1175 = vmatpush1.msra.mxu0 0.0
    %1176 = vmatprep.subr.mxu0 0.0
    %1177 = vmatpush1.msra.mxu0 0.0
    %1178 = vmatprep.subr.mxu0 0.0
    %1179 = vmatpush1.msra.mxu0 0.0
    %1180 = vmatprep.subr.mxu0 0.0
    %1181 = vmatpush1.msra.mxu0 0.0
    %1182 = vmatprep.subr.mxu0 0.0
    %1183 = vmatpush1.msra.mxu0 0.0
    %1184 = vmatprep.subr.mxu0 0.0
    %1185 = vmatpush1.msra.mxu0 0.0
    %1186 = vmatprep.subr.mxu0 0.0
    %1187 = vmatpush1.msra.mxu0 0.0
    %1188 = vmatprep.subr.mxu0 0.0
    %1189 = vmatpush1.msra.mxu0 0.0
    %1190 = vmatprep.subr.mxu0 0.0
    %1191 = vmatpush1.msra.mxu0 0.0
    %1192 = vmatprep.subr.mxu0 0.0
    %1193 = vmatpush1.msra.mxu0 0.0
    %1194 = vmatprep.subr.mxu0 0.0
    %1195 = vmatpush1.msra.mxu0 0.0
    %1196 = vmatprep.subr.mxu0 0.0
    %1197 = vmatpush1.msra.mxu0 %v1154
    %1198 = vmatprep.subr.mxu0 0.0
    %1199 = vmatpush1.msra.mxu0 %v1153
    %1200 = vmatprep.subr.mxu0 0.0
    %1201 = vmatpush1.msra.mxu0 %v1152
    %1202 = vmatprep.subr.mxu0 0.0
    %1203 = vmatpush1.msra.mxu0 %v1151
    %1204 = vmatprep.subr.mxu0 0.0
    %1205 = vmatpush2.msra.mxu0 0.0
    %1206 = vmatprep.subr.mxu0 0.0
    %1207 = vmatpush2.msra.mxu0 0.0
    %1208 = vmatprep.subr.mxu0 0.0
    %1209 = vmatpush2.msra.mxu0 0.0
    %1210 = vmatprep.subr.mxu0 0.0
    %1211 = vmatpush2.msra.mxu0 0.0
    %1212 = vmatprep.subr.mxu0 0.0
    %1213 = vmatpush2.msra.mxu0 0.0
    %1214 = vmatprep.subr.mxu0 0.0
    %1215 = vmatpush2.msra.mxu0 0.0
    %1216 = vmatprep.subr.mxu0 0.0
    %1217 = vmatpush2.msra.mxu0 0.0
    %1218 = vmatprep.subr.mxu0 0.0
    %1219 = vmatpush2.msra.mxu0 0.0
    %1220 = vmatprep.subr.mxu0 0.0
    %1221 = vmatpush2.msra.mxu0 0.0
    %1222 = vmatprep.subr.mxu0 0.0
    %1223 = vmatpush2.msra.mxu0 0.0
    %1224 = vmatprep.subr.mxu0 0.0
    %1225 = vmatpush2.msra.mxu0 0.0
    %1226 = vmatprep.subr.mxu0 0.0
    %1227 = vmatpush2.msra.mxu0 0.0
    %1228 = vmatprep.subr.mxu0 0.0
    %1229 = vmatpush2.msra.mxu0 0.0
    %1230 = vmatprep.subr.mxu0 0.0
    %1231 = vmatpush2.msra.mxu0 0.0
    %1232 = vmatprep.subr.mxu0 0.0
    %1233 = vmatpush2.msra.mxu0 0.0
    %1234 = vmatprep.subr.mxu0 0.0
    %1235 = vmatpush2.msra.mxu0 0.0
    %1236 = vmatprep.mubr.f32.mxu0 0.0
    %1237 = vmatmul.mubr.f32.gmra.mxu0 %v1168
    %v1238 = vpop.f32.mrf.mxu0
    %v1239 = vadd.f32 %v1160, %v1238
    %v1240 = vpop.f32.mrf.mxu0
    %1241 = vmatprep.mubr.f32.mxu0 0.0
    %1242 = vmatmul.mubr.f32.gmra.mxu0 %v1170
    %v1243 = vpop.f32.mrf.mxu0
    %v1244 = vadd.f32 %v1160, %v1243
    %v1245 = vpop.f32.mrf.mxu0
    %1246 = vdwg.mxu0
    %vm1247 = vcmask 7168
    %1248 = vst.msk [vmem:[%s10] sm:$0xff] %vm1247, %v1239
    %1249 = vst.msk [vmem:[%s10 + $0x8] sm:$0xff] %vm1247, %v1244
    // Predicated region
    $region50: #{tpu_custom_call.1} parent=1 // pred_check
      _
    $region51: #{tpu_custom_call.1} parent=1 // pred_check_branch
      %1251 = sbr.rel (0) target = $region53
    $region52: #{tpu_custom_call.1} parent=1 // pred_region
      _
    $region53: #{tpu_custom_call.1} parent=1 // pred_fallthru
      _
    // Predicated region
    $region54: #{tpu_custom_call.1} parent=1 // pred_check
      _
    $region55: #{tpu_custom_call.1} parent=1 // pred_check_branch
      %1253 = sbr.rel (0) target = $region57
    $region56: #{tpu_custom_call.1} parent=1 // pred_region
      _
    $region57: #{tpu_custom_call.1} parent=1 // pred_fallthru
      _
    %1254 = vsyncpa [#allocation4], 1
    %1255 = vsyncpa [#allocation6], 1

</llo_original>
